<compile_context>
chip_gen: v5e
topology: v5e:2x2
jax: 0.10.0
libtpu: 0.0.40
codegen_flags: <defaults>
</compile_context>

<pallas_src>
import math
import functools

import jax
import jax.numpy as jnp
import numpy as np
from jax.experimental import pallas as pl
from jax.experimental.pallas import tpu as pltpu

EPS = 1e-6  # LayerNormalization epsilon (added to the *std*, not the variance)


def _layer_norm(x, gamma, beta):
    # Matches the custom LayerNormalization: mean over last dim, *unbiased* std (N-1),
    # eps added to the std, scalar gamma/beta.  Exact reciprocal runs on the EUP.
    d = x.shape[-1]
    mean = jnp.mean(x, axis=-1, keepdims=True)
    var = jnp.sum((x - mean) ** 2, axis=-1, keepdims=True) * (1.0 / (d - 1))
    inv = pl.reciprocal(jnp.sqrt(var) + EPS)
    return gamma * (x - mean) * inv + beta


def _attention(xn, k_ref, v_ref, mask, wq_ref, wo_ref, ctx_ref, *, num_head, compute_dtype):
    # xn: (tq, D) f32 normalized queries.  k_ref/v_ref: (Sk, d_k)/(Sk, d_v) VMEM scratch
    # holding the hoisted, already compute_dtype K/V projections.  mask: (tq, Sk) int8
    # (nonzero == keep).  Per-head contexts land in the lane-dense ctx_ref (tq, d_v)
    # scratch, then ONE (tq, d_v) @ (d_v, D) matmul against the full W_o.
    d_q, d_k, d_v = wq_ref.shape[1], k_ref.shape[1], v_ref.shape[1]
    dqh, dkh, dvh = d_q // num_head, d_k // num_head, d_v // num_head
    exact = compute_dtype == jnp.float32

    q = jnp.dot(xn.astype(compute_dtype), wq_ref[...],
                preferred_element_type=jnp.float32).astype(compute_dtype)
    scale = 1.0 / math.sqrt(dkh)
    keep = mask != 0
    for h in range(num_head):                          # static unroll over heads
        qh = q[:, h * dqh:(h + 1) * dqh]
        kh = k_ref[:, h * dkh:(h + 1) * dkh]
        vh = v_ref[:, h * dvh:(h + 1) * dvh]
        # scores = qh @ kh.T / sqrt(d_head) (contract last dims, no explicit transpose)
        s = jax.lax.dot_general(qh, kh, (((1,), (1,)), ((), ())),
                                preferred_element_type=jnp.float32) * scale
        s = jnp.where(keep, s, -1e9)
        s = s - jnp.max(s, axis=-1, keepdims=True)
        p = jnp.exp(s)
        p = p * pl.reciprocal(jnp.sum(p, axis=-1, keepdims=True), approx=not exact)
        ctx_ref[:, h * dvh:(h + 1) * dvh] = jnp.dot(
            p.astype(compute_dtype), vh,
            preferred_element_type=jnp.float32).astype(compute_dtype)
    return jnp.dot(ctx_ref[...], wo_ref[...], preferred_element_type=jnp.float32)


def decoder_block_kernel(
    x_ref, enc_ref, tgt_mask_ref, src_mask_ref,
    wq_s_ref, wk_s_ref, wv_s_ref, wo_s_ref,
    wq_c_ref, wk_c_ref, wv_c_ref, wo_c_ref,
    w1_ref, b1_ref, w2_ref, b2_ref,
    ln_ref,
    out_ref,
    ks_ref, vs_ref, kc_ref, vc_ref, ctx_s_ref, ctx_c_ref,
    *, num_head, compute_dtype, tq):
    cd = compute_dtype
    qi = pl.program_id(1)

    # ---- hoisted once per batch row (first q-tile): self-attn K/V over LayerNorm(x_full)
    #      and cross-attn K/V over the encoder output, stored in compute_dtype ------------
    @pl.when(qi == 0)
    def _():
        xn_full = _layer_norm(x_ref[0].astype(jnp.float32),
                              ln_ref[0, 0], ln_ref[0, 1]).astype(cd)
        ks_ref[...] = jnp.dot(xn_full, wk_s_ref[...],
                              preferred_element_type=jnp.float32).astype(cd)
        vs_ref[...] = jnp.dot(xn_full, wv_s_ref[...],
                              preferred_element_type=jnp.float32).astype(cd)
        enc = enc_ref[0]                               # already compute_dtype
        kc_ref[...] = jnp.dot(enc, wk_c_ref[...],
                              preferred_element_type=jnp.float32).astype(cd)
        vc_ref[...] = jnp.dot(enc, wv_c_ref[...],
                              preferred_element_type=jnp.float32).astype(cd)

    # ---- per query tile: slice the tq rows out of the resident full-sequence block ------
    row0 = pl.multiple_of(qi * tq, tq)
    x = x_ref[0, pl.ds(row0, tq), :].astype(jnp.float32)   # (tq, D) f32 residual stream
    tgt_mask = tgt_mask_ref[0]                             # (tq, S)      int8
    src_mask = src_mask_ref[0]                             # (tq, S_enc)  int8

    # residual 0: self-attention over norm(x) with target mask (K/V hoisted above)
    x = x + _attention(_layer_norm(x, ln_ref[0, 0], ln_ref[0, 1]),
                       ks_ref, vs_ref, tgt_mask, wq_s_ref, wo_s_ref, ctx_s_ref,
                       num_head=num_head, compute_dtype=cd)

    # residual 1: cross-attention against the (un-normalized) encoder output with src mask
    x = x + _attention(_layer_norm(x, ln_ref[1, 0], ln_ref[1, 1]),
                       kc_ref, vc_ref, src_mask, wq_c_ref, wo_c_ref, ctx_c_ref,
                       num_head=num_head, compute_dtype=cd)

    # residual 2: feed-forward (linear -> relu -> linear); dropout = identity
    xn = _layer_norm(x, ln_ref[2, 0], ln_ref[2, 1])
    h = jnp.maximum(
        jnp.dot(xn.astype(cd), w1_ref[...],
                preferred_element_type=jnp.float32) + b1_ref[...], 0.0)
    x = x + (jnp.dot(h.astype(cd), w2_ref[...],
                     preferred_element_type=jnp.float32) + b2_ref[...])

    out_ref[0] = x.astype(out_ref.dtype)


def _vmem_capacity_bytes():
    # Per-TensorCore VMEM capacity; fall back to the smallest current part (v7x: 64 MiB).
    try:
        cap = int(pltpu.get_tpu_info().vmem_capacity_bytes)
        if cap > 0:
            return cap
    except Exception:
        pass
    return 64 * 1024 * 1024


def _pick_q_tile(S, vmem_capacity):
    # Larger tq amortizes the ~0.35 us per-step overhead; allow 512 on 128-MiB parts
    # (v5e/v6e), cap at 256 on v7x (64 MiB).  Fall back to smaller divisors, else full S.
    if vmem_capacity >= 100 * 1024 * 1024:
        cands = (512, 256, 128, 64, 32, 16, 8)
    else:
        cands = (256, 128, 64, 32, 16, 8)
    for cand in cands:
        if cand <= S and S % cand == 0:
            return cand
    return S


def decoder_block(x, enc, tgt_mask, src_mask, params, *, num_head,
                  compute_dtype=jnp.bfloat16):
    B, S, D = x.shape
    S_enc = enc.shape[1]
    d_ff = params["w1"].shape[1]
    d_qs, d_ks, d_vs = (params["wq_s"].shape[1], params["wk_s"].shape[1],
                        params["wv_s"].shape[1])
    d_qc, d_kc, d_vc = (params["wq_c"].shape[1], params["wk_c"].shape[1],
                        params["wv_c"].shape[1])
    out_dtype = x.dtype
    cd = compute_dtype
    cast = lambda a: a.astype(cd)

    vmem_cap = _vmem_capacity_bytes()
    tq = _pick_q_tile(S, vmem_cap)

    # Constant-index blocks are fetched once; single-buffer them to halve their VMEM cost.
    def wconst(shape):
        return pl.BlockSpec(shape, lambda b, q: (0,) * len(shape),
                            pipeline_mode=pl.Buffered(1))

    def per_batch(s1, s2):
        return pl.BlockSpec((1, s1, s2), lambda b, q: (b, 0, 0))

    def per_qtile(s2):
        return pl.BlockSpec((1, tq, s2), lambda b, q: (b, q, 0))

    grid_spec = pltpu.PrefetchScalarGridSpec(
        num_scalar_prefetch=0,
        grid=(B, S // tq),
        in_specs=[
            per_batch(S, D),         # x: full layer input (f32; residual stream + K/V src)
            per_batch(S_enc, D),     # encoder output (compute_dtype)
            per_qtile(S),            # target mask tile (tq, S)      int8
            per_qtile(S_enc),        # src mask tile    (tq, S_enc)  int8
            wconst((D, d_qs)), wconst((D, d_ks)), wconst((D, d_vs)), wconst((d_vs, D)),
            wconst((D, d_qc)), wconst((D, d_kc)), wconst((D, d_vc)), wconst((d_vc, D)),
            wconst((D, d_ff)), wconst((1, d_ff)),                    # linear1 W, b
            wconst((d_ff, D)), wconst((1, D)),                       # linear2 W, b
            pl.BlockSpec(memory_space=pltpu.MemorySpace.SMEM),       # ln (3,2) gamma/beta
        ],
        out_specs=per_qtile(D),
        scratch_shapes=[
            pltpu.VMEM((S, d_ks), cd), pltpu.VMEM((S, d_vs), cd),          # self-attn K/V
            pltpu.VMEM((S_enc, d_kc), cd), pltpu.VMEM((S_enc, d_vc), cd),  # cross-attn K/V
            pltpu.VMEM((tq, d_vs), cd), pltpu.VMEM((tq, d_vc), cd),        # per-head ctx
        ],
    )

    kern = functools.partial(decoder_block_kernel, num_head=num_head,
                             compute_dtype=cd, tq=tq)
    return pl.pallas_call(
        kern,
        out_shape=jax.ShapeDtypeStruct((B, S, D), out_dtype),
        grid_spec=grid_spec,
        compiler_params=pltpu.CompilerParams(
            # q axis carries the hoisted K/V scratch -> must not be core-sharded.
            dimension_semantics=("parallel", "arbitrary"),
            vmem_limit_bytes=int(vmem_cap * 0.85)),
    )(x.astype(jnp.float32), cast(enc),
      (tgt_mask != 0).astype(jnp.int8), (src_mask != 0).astype(jnp.int8),
      cast(params["wq_s"]), cast(params["wk_s"]), cast(params["wv_s"]), cast(params["wo_s"]),
      cast(params["wq_c"]), cast(params["wk_c"]), cast(params["wv_c"]), cast(params["wo_c"]),
      cast(params["w1"]), params["b1"].astype(jnp.float32),
      cast(params["w2"]), params["b2"].astype(jnp.float32),
      params["ln"].astype(jnp.float32))


def reference_decoder_block(x, enc, tgt_mask, src_mask, params, *, num_head,
                            compute_dtype=jnp.float32):
    # Pure-JAX reference mirroring the PyTorch forward (eval mode).  compute_dtype
    # controls the matmul operand dtype (f32 -> exact semantics; bf16 -> matches kernel).
    cd = compute_dtype

    def ln(x, g, b):
        d = x.shape[-1]
        mean = jnp.mean(x, axis=-1, keepdims=True)
        std = jnp.sqrt(jnp.sum((x - mean) ** 2, axis=-1, keepdims=True) / (d - 1))
        return g * (x - mean) / (std + EPS) + b

    def mm(a, b):
        return jnp.dot(a.astype(cd), b.astype(cd), preferred_element_type=jnp.float32)

    def mha(xq, xkv, mask, wq, wk, wv, wo):
        B, Sq, _ = xq.shape
        Sk = xkv.shape[1]
        dq, dk, dv = (wq.shape[1] // num_head, wk.shape[1] // num_head,
                      wv.shape[1] // num_head)
        q = mm(xq, wq).reshape(B, Sq, num_head, dq).transpose(0, 2, 1, 3)
        k = mm(xkv, wk).reshape(B, Sk, num_head, dk).transpose(0, 2, 1, 3)
        v = mm(xkv, wv).reshape(B, Sk, num_head, dv).transpose(0, 2, 1, 3)
        s = jnp.einsum("bhqd,bhkd->bhqk", q.astype(cd), k.astype(cd),
                       preferred_element_type=jnp.float32) / math.sqrt(dk)
        s = jnp.where(mask[:, None, :, :] == 0, -1e9, s)
        a = jax.nn.softmax(s, axis=-1)
        o = jnp.einsum("bhqk,bhkd->bhqd", a.astype(cd), v.astype(cd),
                       preferred_element_type=jnp.float32)
        o = o.transpose(0, 2, 1, 3).reshape(B, Sq, num_head * dv)
        return mm(o, wo)

    g = params["ln"]
    xn = ln(x, g[0, 0], g[0, 1])
    x = x + mha(xn, xn, tgt_mask,
                params["wq_s"], params["wk_s"], params["wv_s"], params["wo_s"])
    xn = ln(x, g[1, 0], g[1, 1])
    x = x + mha(xn, enc, src_mask,
                params["wq_c"], params["wk_c"], params["wv_c"], params["wo_c"])
    xn = ln(x, g[2, 0], g[2, 1])
    h = jnp.maximum(mm(xn, params["w1"]) + params["b1"], 0.0)
    x = x + (mm(h, params["w2"]) + params["b2"])
    return x


if __name__ == "__main__":
    B, S, S_enc, D, d_ff, num_head = 2, 8, 8, 32, 64, 2

    key = jax.random.PRNGKey(0)
    keys = jax.random.split(key, 16)
    # NOTE: the torch module inits attention weights with torch.rand(d, d); at these shapes
    # that yields O(1e3) attention logits (a degenerate, near-one-hot softmax).  The example
    # inputs below use transformer-realistic weight scales (zero-mean, ~1/sqrt(fan_in)) so
    # the bf16-operand fast path can be validated meaningfully; the forward math is unchanged.
    w = lambda k, shape, fan: jax.random.uniform(k, shape, jnp.float32, -1.0, 1.0) / math.sqrt(fan)

    params = {
        "wq_s": w(keys[0], (D, D), D), "wk_s": w(keys[1], (D, D), D),
        "wv_s": w(keys[2], (D, D), D), "wo_s": w(keys[3], (D, D), D),
        "wq_c": w(keys[4], (D, D), D), "wk_c": w(keys[5], (D, D), D),
        "wv_c": w(keys[6], (D, D), D), "wo_c": w(keys[7], (D, D), D),
        "w1": w(keys[8], (D, d_ff), D), "b1": w(keys[9], (1, d_ff), D),
        "w2": w(keys[10], (d_ff, D), d_ff), "b2": w(keys[11], (1, D), d_ff),
        # LayerNormalization: gamma = ones(1), beta = ones(1); 3 residual connections.
        "ln": jnp.ones((3, 2), jnp.float32),
    }

    x = jax.random.normal(keys[12], (B, S, D), jnp.float32)
    enc = jax.random.normal(keys[13], (B, S_enc, D), jnp.float32)
    # causal target mask; src mask with the last two encoder positions padded for batch 1
    tgt_mask = jnp.tile(jnp.tril(jnp.ones((S, S), jnp.int32))[None], (B, 1, 1))
    src_mask = jnp.ones((B, S, S_enc), jnp.int32).at[1, :, S_enc - 2:].set(0)

    # exact-semantics check: f32 operands everywhere
    out_f32 = jax.block_until_ready(
        decoder_block(x, enc, tgt_mask, src_mask, params, num_head=num_head,
                      compute_dtype=jnp.float32))
    # fast path (default): bf16 matmul operands, f32 accumulation, f32 residual stream
    out_bf16 = jax.block_until_ready(
        decoder_block(x, enc, tgt_mask, src_mask, params, num_head=num_head))

    with jax.default_matmul_precision("float32"):
        ref_f32 = reference_decoder_block(x, enc, tgt_mask, src_mask, params,
                                          num_head=num_head, compute_dtype=jnp.float32)
        ref_bf16 = reference_decoder_block(x, enc, tgt_mask, src_mask, params,
                                           num_head=num_head, compute_dtype=jnp.bfloat16)

    np.testing.assert_allclose(np.asarray(out_f32), np.asarray(ref_f32),
                               rtol=2e-2, atol=2e-2)
    np.testing.assert_allclose(np.asarray(out_bf16), np.asarray(ref_bf16),
                               rtol=5e-2, atol=5e-2)
    print("KERNEL_OK")
</pallas_src>

<mosaic_0001>
module attributes {stable_mosaic.version = 11 : i64} {
  func.func @decoder_block_kernel(%arg0: i32, %arg1: i32, %arg2: memref<1x8x32xf32, #tpu.memory_space<vmem>>, %arg3: memref<1x8x32xf32, #tpu.memory_space<vmem>>, %arg4: memref<1x8x8xi8, #tpu.memory_space<vmem>>, %arg5: memref<1x8x8xi8, #tpu.memory_space<vmem>>, %arg6: memref<32x32xf32, #tpu.memory_space<vmem>>, %arg7: memref<32x32xf32, #tpu.memory_space<vmem>>, %arg8: memref<32x32xf32, #tpu.memory_space<vmem>>, %arg9: memref<32x32xf32, #tpu.memory_space<vmem>>, %arg10: memref<32x32xf32, #tpu.memory_space<vmem>>, %arg11: memref<32x32xf32, #tpu.memory_space<vmem>>, %arg12: memref<32x32xf32, #tpu.memory_space<vmem>>, %arg13: memref<32x32xf32, #tpu.memory_space<vmem>>, %arg14: memref<32x64xf32, #tpu.memory_space<vmem>>, %arg15: memref<1x64xf32, #tpu.memory_space<vmem>>, %arg16: memref<64x32xf32, #tpu.memory_space<vmem>>, %arg17: memref<1x32xf32, #tpu.memory_space<vmem>>, %arg18: memref<3x2xf32, #tpu.memory_space<smem>>, %arg19: memref<1x8x32xf32, #tpu.memory_space<vmem>>, %arg20: memref<8x32xf32, #tpu.memory_space<vmem>>, %arg21: memref<8x32xf32, #tpu.memory_space<vmem>>, %arg22: memref<8x32xf32, #tpu.memory_space<vmem>>, %arg23: memref<8x32xf32, #tpu.memory_space<vmem>>, %arg24: memref<8x32xf32, #tpu.memory_space<vmem>>, %arg25: memref<8x32xf32, #tpu.memory_space<vmem>>) attributes {dimension_semantics = [#tpu.dimension_semantics<parallel>, #tpu.dimension_semantics<arbitrary>], iteration_bounds = array<i64: 2, 1>, scalar_prefetch = 0 : i64, scratch_operands = 6 : i64, tpu.core_type = #tpu.core_type<tc>, window_params = [{transform_indices = @transform_0, window_bounds = array<i64: 1, 8, 32>}, {transform_indices = @transform_1, window_bounds = array<i64: 1, 8, 32>}, {transform_indices = @transform_2, window_bounds = array<i64: 1, 8, 8>}, {transform_indices = @transform_3, window_bounds = array<i64: 1, 8, 8>}, {pipeline_mode = #tpu.pipeline_mode<synchronous>, transform_indices = @transform_4, window_bounds = array<i64: 32, 32>}, {pipeline_mode = #tpu.pipeline_mode<synchronous>, transform_indices = @transform_5, window_bounds = array<i64: 32, 32>}, {pipeline_mode = #tpu.pipeline_mode<synchronous>, transform_indices = @transform_6, window_bounds = array<i64: 32, 32>}, {pipeline_mode = #tpu.pipeline_mode<synchronous>, transform_indices = @transform_7, window_bounds = array<i64: 32, 32>}, {pipeline_mode = #tpu.pipeline_mode<synchronous>, transform_indices = @transform_8, window_bounds = array<i64: 32, 32>}, {pipeline_mode = #tpu.pipeline_mode<synchronous>, transform_indices = @transform_9, window_bounds = array<i64: 32, 32>}, {pipeline_mode = #tpu.pipeline_mode<synchronous>, transform_indices = @transform_10, window_bounds = array<i64: 32, 32>}, {pipeline_mode = #tpu.pipeline_mode<synchronous>, transform_indices = @transform_11, window_bounds = array<i64: 32, 32>}, {pipeline_mode = #tpu.pipeline_mode<synchronous>, transform_indices = @transform_12, window_bounds = array<i64: 32, 64>}, {pipeline_mode = #tpu.pipeline_mode<synchronous>, transform_indices = @transform_13, window_bounds = array<i64: 1, 64>}, {pipeline_mode = #tpu.pipeline_mode<synchronous>, transform_indices = @transform_14, window_bounds = array<i64: 64, 32>}, {pipeline_mode = #tpu.pipeline_mode<synchronous>, transform_indices = @transform_15, window_bounds = array<i64: 1, 32>}, {transform_indices = @transform_16, window_bounds = array<i64: 3, 2>}, {transform_indices = @transform_17, window_bounds = array<i64: 1, 8, 32>}]} {
    %c0_i32 = arith.constant 0 : i32
    %0 = arith.cmpi eq, %arg1, %c0_i32 : i32
    %1 = arith.extui %0 : i1 to i32
    %c0_i32_0 = arith.constant 0 : i32
    %2 = arith.cmpi ne, %1, %c0_i32_0 : i32
    scf.if %2 {
      %c0_110 = arith.constant 0 : index
      %c0_111 = arith.constant 0 : index
      %c0_112 = arith.constant 0 : index
      %199 = vector.load %arg2[%c0_110, %c0_111, %c0_112] : memref<1x8x32xf32, #tpu.memory_space<vmem>>, vector<1x8x32xf32>
      %200 = vector.shape_cast %199 : vector<1x8x32xf32> to vector<8x32xf32>
      %c0_113 = arith.constant 0 : index
      %c0_114 = arith.constant 0 : index
      %201 = memref.load %arg18[%c0_113, %c0_114] : memref<3x2xf32, #tpu.memory_space<smem>>
      %c0_115 = arith.constant 0 : index
      %c1_116 = arith.constant 1 : index
      %202 = memref.load %arg18[%c0_115, %c1_116] : memref<3x2xf32, #tpu.memory_space<smem>>
      %cst_117 = arith.constant dense<0.000000e+00> : vector<8xf32>
      %203 = vector.multi_reduction <add>, %200, %cst_117 [1] : vector<8x32xf32> to vector<8xf32>
      %204 = vector.shape_cast %203 : vector<8xf32> to vector<8x1xf32>
      %cst_118 = arith.constant 3.200000e+01 : f32
      %205 = vector.broadcast %cst_118 : f32 to vector<8x1xf32>
      %206 = arith.divf %204, %205 : vector<8x1xf32>
      %207 = vector.broadcast %206 : vector<8x1xf32> to vector<8x32xf32>
      %208 = arith.subf %200, %207 : vector<8x32xf32>
      %209 = arith.mulf %208, %208 : vector<8x32xf32>
      %cst_119 = arith.constant dense<0.000000e+00> : vector<8xf32>
      %210 = vector.multi_reduction <add>, %209, %cst_119 [1] : vector<8x32xf32> to vector<8xf32>
      %211 = vector.shape_cast %210 : vector<8xf32> to vector<8x1xf32>
      %cst_120 = arith.constant 0.0322580636 : f32
      %212 = vector.broadcast %cst_120 : f32 to vector<8x1xf32>
      %213 = arith.mulf %211, %212 : vector<8x1xf32>
      %214 = math.sqrt %213 : vector<8x1xf32>
      %cst_121 = arith.constant 9.99999997E-7 : f32
      %215 = vector.broadcast %cst_121 : f32 to vector<8x1xf32>
      %216 = arith.addf %214, %215 : vector<8x1xf32>
      %217 = tpu.reciprocal %216 : vector<8x1xf32> -> vector<8x1xf32>
      %218 = vector.broadcast %206 : vector<8x1xf32> to vector<8x32xf32>
      %219 = arith.subf %200, %218 : vector<8x32xf32>
      %220 = vector.broadcast %201 : f32 to vector<8x32xf32>
      %221 = arith.mulf %220, %219 : vector<8x32xf32>
      %222 = vector.broadcast %217 : vector<8x1xf32> to vector<8x32xf32>
      %223 = arith.mulf %221, %222 : vector<8x32xf32>
      %224 = vector.broadcast %202 : f32 to vector<8x32xf32>
      %225 = arith.addf %223, %224 : vector<8x32xf32>
      %c0_122 = arith.constant 0 : index
      %c0_123 = arith.constant 0 : index
      %226 = vector.load %arg7[%c0_122, %c0_123] : memref<32x32xf32, #tpu.memory_space<vmem>>, vector<32x32xf32>
      %cst_124 = arith.constant dense<0.000000e+00> : vector<8x32xf32>
      %227 = tpu.matmul %225, %226, %cst_124 {dimension_numbers = #tpu.dot_dimension_numbers<[1], [0], [0], [1], [0, 0, 1, 1], [], []>} : vector<8x32xf32>, vector<32x32xf32>, vector<8x32xf32> -> vector<8x32xf32>
      %c0_125 = arith.constant 0 : index
      %c0_126 = arith.constant 0 : index
      %228 = vector.load %arg20[%c0_125, %c0_126] : memref<8x32xf32, #tpu.memory_space<vmem>>, vector<8x32xf32>
      tpu.vector_store %arg20[%c0_125, %c0_126], %227 {strides = array<i32>} : memref<8x32xf32, #tpu.memory_space<vmem>>, vector<8x32xf32>,
      %c0_127 = arith.constant 0 : index
      %c0_128 = arith.constant 0 : index
      %229 = vector.load %arg8[%c0_127, %c0_128] : memref<32x32xf32, #tpu.memory_space<vmem>>, vector<32x32xf32>
      %cst_129 = arith.constant dense<0.000000e+00> : vector<8x32xf32>
      %230 = tpu.matmul %225, %229, %cst_129 {dimension_numbers = #tpu.dot_dimension_numbers<[1], [0], [0], [1], [0, 0, 1, 1], [], []>} : vector<8x32xf32>, vector<32x32xf32>, vector<8x32xf32> -> vector<8x32xf32>
      %c0_130 = arith.constant 0 : index
      %c0_131 = arith.constant 0 : index
      %231 = vector.load %arg21[%c0_130, %c0_131] : memref<8x32xf32, #tpu.memory_space<vmem>>, vector<8x32xf32>
      tpu.vector_store %arg21[%c0_130, %c0_131], %230 {strides = array<i32>} : memref<8x32xf32, #tpu.memory_space<vmem>>, vector<8x32xf32>,
      %c0_132 = arith.constant 0 : index
      %c0_133 = arith.constant 0 : index
      %c0_134 = arith.constant 0 : index
      %232 = vector.load %arg3[%c0_132, %c0_133, %c0_134] : memref<1x8x32xf32, #tpu.memory_space<vmem>>, vector<1x8x32xf32>
      %233 = vector.shape_cast %232 : vector<1x8x32xf32> to vector<8x32xf32>
      %c0_135 = arith.constant 0 : index
      %c0_136 = arith.constant 0 : index
      %234 = vector.load %arg11[%c0_135, %c0_136] : memref<32x32xf32, #tpu.memory_space<vmem>>, vector<32x32xf32>
      %cst_137 = arith.constant dense<0.000000e+00> : vector<8x32xf32>
      %235 = tpu.matmul %233, %234, %cst_137 {dimension_numbers = #tpu.dot_dimension_numbers<[1], [0], [0], [1], [0, 0, 1, 1], [], []>} : vector<8x32xf32>, vector<32x32xf32>, vector<8x32xf32> -> vector<8x32xf32>
      %c0_138 = arith.constant 0 : index
      %c0_139 = arith.constant 0 : index
      %236 = vector.load %arg22[%c0_138, %c0_139] : memref<8x32xf32, #tpu.memory_space<vmem>>, vector<8x32xf32>
      tpu.vector_store %arg22[%c0_138, %c0_139], %235 {strides = array<i32>} : memref<8x32xf32, #tpu.memory_space<vmem>>, vector<8x32xf32>,
      %c0_140 = arith.constant 0 : index
      %c0_141 = arith.constant 0 : index
      %237 = vector.load %arg12[%c0_140, %c0_141] : memref<32x32xf32, #tpu.memory_space<vmem>>, vector<32x32xf32>
      %cst_142 = arith.constant dense<0.000000e+00> : vector<8x32xf32>
      %238 = tpu.matmul %233, %237, %cst_142 {dimension_numbers = #tpu.dot_dimension_numbers<[1], [0], [0], [1], [0, 0, 1, 1], [], []>} : vector<8x32xf32>, vector<32x32xf32>, vector<8x32xf32> -> vector<8x32xf32>
      %c0_143 = arith.constant 0 : index
      %c0_144 = arith.constant 0 : index
      %239 = vector.load %arg23[%c0_143, %c0_144] : memref<8x32xf32, #tpu.memory_space<vmem>>, vector<8x32xf32>
      tpu.vector_store %arg23[%c0_143, %c0_144], %238 {strides = array<i32>} : memref<8x32xf32, #tpu.memory_space<vmem>>, vector<8x32xf32>,
    } else {
    }
    %c8_i32 = arith.constant 8 : i32
    %3 = arith.muli %arg1, %c8_i32 : i32
    %4 = tpu.assume_multiple %3, 8 : i32
    %c0 = arith.constant 0 : index
    %5 = arith.index_cast %4 : i32 to index
    %c0_1 = arith.constant 0 : index
    %6 = vector.load %arg2[%c0, %5, %c0_1] : memref<1x8x32xf32, #tpu.memory_space<vmem>>, vector<1x8x32xf32>
    %7 = vector.shape_cast %6 : vector<1x8x32xf32> to vector<8x32xf32>
    %c0_2 = arith.constant 0 : index
    %c0_3 = arith.constant 0 : index
    %c0_4 = arith.constant 0 : index
    %8 = vector.load %arg4[%c0_2, %c0_3, %c0_4] : memref<1x8x8xi8, #tpu.memory_space<vmem>>, vector<1x8x8xi8>
    %9 = vector.shape_cast %8 : vector<1x8x8xi8> to vector<8x8xi8>
    %c0_5 = arith.constant 0 : index
    %c0_6 = arith.constant 0 : index
    %c0_7 = arith.constant 0 : index
    %10 = vector.load %arg5[%c0_5, %c0_6, %c0_7] : memref<1x8x8xi8, #tpu.memory_space<vmem>>, vector<1x8x8xi8>
    %11 = vector.shape_cast %10 : vector<1x8x8xi8> to vector<8x8xi8>
    %c0_8 = arith.constant 0 : index
    %c0_9 = arith.constant 0 : index
    %12 = memref.load %arg18[%c0_8, %c0_9] : memref<3x2xf32, #tpu.memory_space<smem>>
    %c0_10 = arith.constant 0 : index
    %c1 = arith.constant 1 : index
    %13 = memref.load %arg18[%c0_10, %c1] : memref<3x2xf32, #tpu.memory_space<smem>>
    %cst = arith.constant dense<0.000000e+00> : vector<8xf32>
    %14 = vector.multi_reduction <add>, %7, %cst [1] : vector<8x32xf32> to vector<8xf32>
    %15 = vector.shape_cast %14 : vector<8xf32> to vector<8x1xf32>
    %cst_11 = arith.constant 3.200000e+01 : f32
    %16 = vector.broadcast %cst_11 : f32 to vector<8x1xf32>
    %17 = arith.divf %15, %16 : vector<8x1xf32>
    %18 = vector.broadcast %17 : vector<8x1xf32> to vector<8x32xf32>
    %19 = arith.subf %7, %18 : vector<8x32xf32>
    %20 = arith.mulf %19, %19 : vector<8x32xf32>
    %cst_12 = arith.constant dense<0.000000e+00> : vector<8xf32>
    %21 = vector.multi_reduction <add>, %20, %cst_12 [1] : vector<8x32xf32> to vector<8xf32>
    %22 = vector.shape_cast %21 : vector<8xf32> to vector<8x1xf32>
    %cst_13 = arith.constant 0.0322580636 : f32
    %23 = vector.broadcast %cst_13 : f32 to vector<8x1xf32>
    %24 = arith.mulf %22, %23 : vector<8x1xf32>
    %25 = math.sqrt %24 : vector<8x1xf32>
    %cst_14 = arith.constant 9.99999997E-7 : f32
    %26 = vector.broadcast %cst_14 : f32 to vector<8x1xf32>
    %27 = arith.addf %25, %26 : vector<8x1xf32>
    %28 = tpu.reciprocal %27 : vector<8x1xf32> -> vector<8x1xf32>
    %29 = vector.broadcast %17 : vector<8x1xf32> to vector<8x32xf32>
    %30 = arith.subf %7, %29 : vector<8x32xf32>
    %31 = vector.broadcast %12 : f32 to vector<8x32xf32>
    %32 = arith.mulf %31, %30 : vector<8x32xf32>
    %33 = vector.broadcast %28 : vector<8x1xf32> to vector<8x32xf32>
    %34 = arith.mulf %32, %33 : vector<8x32xf32>
    %35 = vector.broadcast %13 : f32 to vector<8x32xf32>
    %36 = arith.addf %34, %35 : vector<8x32xf32>
    %c0_15 = arith.constant 0 : index
    %c0_16 = arith.constant 0 : index
    %37 = vector.load %arg6[%c0_15, %c0_16] : memref<32x32xf32, #tpu.memory_space<vmem>>, vector<32x32xf32>
    %cst_17 = arith.constant dense<0.000000e+00> : vector<8x32xf32>
    %38 = tpu.matmul %36, %37, %cst_17 {dimension_numbers = #tpu.dot_dimension_numbers<[1], [0], [0], [1], [0, 0, 1, 1], [], []>} : vector<8x32xf32>, vector<32x32xf32>, vector<8x32xf32> -> vector<8x32xf32>
    %c0_i8 = arith.constant 0 : i8
    %39 = vector.broadcast %c0_i8 : i8 to vector<8x8xi8>
    %40 = arith.cmpi ne, %9, %39 : vector<8x8xi8>
    %41 = vector.extract_strided_slice %38 {offsets = [0, 0], sizes = [8, 16], strides = [1, 1]} : vector<8x32xf32> to vector<8x16xf32>
    %c0_18 = arith.constant 0 : index
    %c0_19 = arith.constant 0 : index
    %42 = vector.load %arg20[%c0_18, %c0_19] : memref<8x32xf32, #tpu.memory_space<vmem>>, vector<8x16xf32>
    %c0_20 = arith.constant 0 : index
    %c0_21 = arith.constant 0 : index
    %43 = vector.load %arg21[%c0_20, %c0_21] : memref<8x32xf32, #tpu.memory_space<vmem>>, vector<8x16xf32>
    %cst_22 = arith.constant dense<0.000000e+00> : vector<8x8xf32>
    %44 = tpu.matmul %41, %42, %cst_22 {dimension_numbers = #tpu.dot_dimension_numbers<[1], [1], [0], [0], [0, 0, 1, 0], [], []>} : vector<8x16xf32>, vector<8x16xf32>, vector<8x8xf32> -> vector<8x8xf32>
    %cst_23 = arith.constant 2.500000e-01 : f32
    %45 = vector.broadcast %cst_23 : f32 to vector<8x8xf32>
    %46 = arith.mulf %44, %45 : vector<8x8xf32>
    %cst_24 = arith.constant -1.000000e+09 : f32
    %47 = vector.broadcast %cst_24 : f32 to vector<8x8xf32>
    %48 = arith.select %40, %46, %47 : vector<8x8xi1>, vector<8x8xf32>
    %cst_25 = arith.constant dense<0xFF800000> : vector<8xf32>
    %49 = vector.multi_reduction <maximumf>, %48, %cst_25 [1] : vector<8x8xf32> to vector<8xf32>
    %50 = vector.shape_cast %49 : vector<8xf32> to vector<8x1xf32>
    %51 = vector.broadcast %50 : vector<8x1xf32> to vector<8x8xf32>
    %52 = arith.subf %48, %51 : vector<8x8xf32>
    %53 = math.exp %52 : vector<8x8xf32>
    %cst_26 = arith.constant dense<0.000000e+00> : vector<8xf32>
    %54 = vector.multi_reduction <add>, %53, %cst_26 [1] : vector<8x8xf32> to vector<8xf32>
    %55 = vector.shape_cast %54 : vector<8xf32> to vector<8x1xf32>
    %56 = tpu.reciprocal %55 : vector<8x1xf32> -> vector<8x1xf32>
    %57 = vector.broadcast %56 : vector<8x1xf32> to vector<8x8xf32>
    %58 = arith.mulf %53, %57 : vector<8x8xf32>
    %cst_27 = arith.constant dense<0.000000e+00> : vector<8x16xf32>
    %59 = tpu.matmul %58, %43, %cst_27 {dimension_numbers = #tpu.dot_dimension_numbers<[1], [0], [0], [1], [0, 0, 1, 1], [], []>} : vector<8x8xf32>, vector<8x16xf32>, vector<8x16xf32> -> vector<8x16xf32>
    %c0_28 = arith.constant 0 : index
    %c0_29 = arith.constant 0 : index
    %60 = vector.load %arg24[%c0_28, %c0_29] : memref<8x32xf32, #tpu.memory_space<vmem>>, vector<8x16xf32>
    tpu.vector_store %arg24[%c0_28, %c0_29], %59 {strides = array<i32>} : memref<8x32xf32, #tpu.memory_space<vmem>>, vector<8x16xf32>,
    %61 = vector.extract_strided_slice %38 {offsets = [0, 16], sizes = [8, 16], strides = [1, 1]} : vector<8x32xf32> to vector<8x16xf32>
    %c0_30 = arith.constant 0 : index
    %c16 = arith.constant 16 : index
    %62 = vector.load %arg20[%c0_30, %c16] : memref<8x32xf32, #tpu.memory_space<vmem>>, vector<8x16xf32>
    %c0_31 = arith.constant 0 : index
    %c16_32 = arith.constant 16 : index
    %63 = vector.load %arg21[%c0_31, %c16_32] : memref<8x32xf32, #tpu.memory_space<vmem>>, vector<8x16xf32>
    %cst_33 = arith.constant dense<0.000000e+00> : vector<8x8xf32>
    %64 = tpu.matmul %61, %62, %cst_33 {dimension_numbers = #tpu.dot_dimension_numbers<[1], [1], [0], [0], [0, 0, 1, 0], [], []>} : vector<8x16xf32>, vector<8x16xf32>, vector<8x8xf32> -> vector<8x8xf32>
    %cst_34 = arith.constant 2.500000e-01 : f32
    %65 = vector.broadcast %cst_34 : f32 to vector<8x8xf32>
    %66 = arith.mulf %64, %65 : vector<8x8xf32>
    %cst_35 = arith.constant -1.000000e+09 : f32
    %67 = vector.broadcast %cst_35 : f32 to vector<8x8xf32>
    %68 = arith.select %40, %66, %67 : vector<8x8xi1>, vector<8x8xf32>
    %cst_36 = arith.constant dense<0xFF800000> : vector<8xf32>
    %69 = vector.multi_reduction <maximumf>, %68, %cst_36 [1] : vector<8x8xf32> to vector<8xf32>
    %70 = vector.shape_cast %69 : vector<8xf32> to vector<8x1xf32>
    %71 = vector.broadcast %70 : vector<8x1xf32> to vector<8x8xf32>
    %72 = arith.subf %68, %71 : vector<8x8xf32>
    %73 = math.exp %72 : vector<8x8xf32>
    %cst_37 = arith.constant dense<0.000000e+00> : vector<8xf32>
    %74 = vector.multi_reduction <add>, %73, %cst_37 [1] : vector<8x8xf32> to vector<8xf32>
    %75 = vector.shape_cast %74 : vector<8xf32> to vector<8x1xf32>
    %76 = tpu.reciprocal %75 : vector<8x1xf32> -> vector<8x1xf32>
    %77 = vector.broadcast %76 : vector<8x1xf32> to vector<8x8xf32>
    %78 = arith.mulf %73, %77 : vector<8x8xf32>
    %cst_38 = arith.constant dense<0.000000e+00> : vector<8x16xf32>
    %79 = tpu.matmul %78, %63, %cst_38 {dimension_numbers = #tpu.dot_dimension_numbers<[1], [0], [0], [1], [0, 0, 1, 1], [], []>} : vector<8x8xf32>, vector<8x16xf32>, vector<8x16xf32> -> vector<8x16xf32>
    %c0_39 = arith.constant 0 : index
    %c16_40 = arith.constant 16 : index
    %80 = vector.load %arg24[%c0_39, %c16_40] : memref<8x32xf32, #tpu.memory_space<vmem>>, vector<8x16xf32>
    tpu.vector_store %arg24[%c0_39, %c16_40], %79 {strides = array<i32>} : memref<8x32xf32, #tpu.memory_space<vmem>>, vector<8x16xf32>,
    %c0_41 = arith.constant 0 : index
    %c0_42 = arith.constant 0 : index
    %81 = vector.load %arg24[%c0_41, %c0_42] : memref<8x32xf32, #tpu.memory_space<vmem>>, vector<8x32xf32>
    %c0_43 = arith.constant 0 : index
    %c0_44 = arith.constant 0 : index
    %82 = vector.load %arg9[%c0_43, %c0_44] : memref<32x32xf32, #tpu.memory_space<vmem>>, vector<32x32xf32>
    %cst_45 = arith.constant dense<0.000000e+00> : vector<8x32xf32>
    %83 = tpu.matmul %81, %82, %cst_45 {dimension_numbers = #tpu.dot_dimension_numbers<[1], [0], [0], [1], [0, 0, 1, 1], [], []>} : vector<8x32xf32>, vector<32x32xf32>, vector<8x32xf32> -> vector<8x32xf32>
    %84 = arith.addf %7, %83 : vector<8x32xf32>
    %c1_46 = arith.constant 1 : index
    %c0_47 = arith.constant 0 : index
    %85 = memref.load %arg18[%c1_46, %c0_47] : memref<3x2xf32, #tpu.memory_space<smem>>
    %c1_48 = arith.constant 1 : index
    %c1_49 = arith.constant 1 : index
    %86 = memref.load %arg18[%c1_48, %c1_49] : memref<3x2xf32, #tpu.memory_space<smem>>
    %cst_50 = arith.constant dense<0.000000e+00> : vector<8xf32>
    %87 = vector.multi_reduction <add>, %84, %cst_50 [1] : vector<8x32xf32> to vector<8xf32>
    %88 = vector.shape_cast %87 : vector<8xf32> to vector<8x1xf32>
    %cst_51 = arith.constant 3.200000e+01 : f32
    %89 = vector.broadcast %cst_51 : f32 to vector<8x1xf32>
    %90 = arith.divf %88, %89 : vector<8x1xf32>
    %91 = vector.broadcast %90 : vector<8x1xf32> to vector<8x32xf32>
    %92 = arith.subf %84, %91 : vector<8x32xf32>
    %93 = arith.mulf %92, %92 : vector<8x32xf32>
    %cst_52 = arith.constant dense<0.000000e+00> : vector<8xf32>
    %94 = vector.multi_reduction <add>, %93, %cst_52 [1] : vector<8x32xf32> to vector<8xf32>
    %95 = vector.shape_cast %94 : vector<8xf32> to vector<8x1xf32>
    %cst_53 = arith.constant 0.0322580636 : f32
    %96 = vector.broadcast %cst_53 : f32 to vector<8x1xf32>
    %97 = arith.mulf %95, %96 : vector<8x1xf32>
    %98 = math.sqrt %97 : vector<8x1xf32>
    %cst_54 = arith.constant 9.99999997E-7 : f32
    %99 = vector.broadcast %cst_54 : f32 to vector<8x1xf32>
    %100 = arith.addf %98, %99 : vector<8x1xf32>
    %101 = tpu.reciprocal %100 : vector<8x1xf32> -> vector<8x1xf32>
    %102 = vector.broadcast %90 : vector<8x1xf32> to vector<8x32xf32>
    %103 = arith.subf %84, %102 : vector<8x32xf32>
    %104 = vector.broadcast %85 : f32 to vector<8x32xf32>
    %105 = arith.mulf %104, %103 : vector<8x32xf32>
    %106 = vector.broadcast %101 : vector<8x1xf32> to vector<8x32xf32>
    %107 = arith.mulf %105, %106 : vector<8x32xf32>
    %108 = vector.broadcast %86 : f32 to vector<8x32xf32>
    %109 = arith.addf %107, %108 : vector<8x32xf32>
    %c0_55 = arith.constant 0 : index
    %c0_56 = arith.constant 0 : index
    %110 = vector.load %arg10[%c0_55, %c0_56] : memref<32x32xf32, #tpu.memory_space<vmem>>, vector<32x32xf32>
    %cst_57 = arith.constant dense<0.000000e+00> : vector<8x32xf32>
    %111 = tpu.matmul %109, %110, %cst_57 {dimension_numbers = #tpu.dot_dimension_numbers<[1], [0], [0], [1], [0, 0, 1, 1], [], []>} : vector<8x32xf32>, vector<32x32xf32>, vector<8x32xf32> -> vector<8x32xf32>
    %c0_i8_58 = arith.constant 0 : i8
    %112 = vector.broadcast %c0_i8_58 : i8 to vector<8x8xi8>
    %113 = arith.cmpi ne, %11, %112 : vector<8x8xi8>
    %114 = vector.extract_strided_slice %111 {offsets = [0, 0], sizes = [8, 16], strides = [1, 1]} : vector<8x32xf32> to vector<8x16xf32>
    %c0_59 = arith.constant 0 : index
    %c0_60 = arith.constant 0 : index
    %115 = vector.load %arg22[%c0_59, %c0_60] : memref<8x32xf32, #tpu.memory_space<vmem>>, vector<8x16xf32>
    %c0_61 = arith.constant 0 : index
    %c0_62 = arith.constant 0 : index
    %116 = vector.load %arg23[%c0_61, %c0_62] : memref<8x32xf32, #tpu.memory_space<vmem>>, vector<8x16xf32>
    %cst_63 = arith.constant dense<0.000000e+00> : vector<8x8xf32>
    %117 = tpu.matmul %114, %115, %cst_63 {dimension_numbers = #tpu.dot_dimension_numbers<[1], [1], [0], [0], [0, 0, 1, 0], [], []>} : vector<8x16xf32>, vector<8x16xf32>, vector<8x8xf32> -> vector<8x8xf32>
    %cst_64 = arith.constant 2.500000e-01 : f32
    %118 = vector.broadcast %cst_64 : f32 to vector<8x8xf32>
    %119 = arith.mulf %117, %118 : vector<8x8xf32>
    %cst_65 = arith.constant -1.000000e+09 : f32
    %120 = vector.broadcast %cst_65 : f32 to vector<8x8xf32>
    %121 = arith.select %113, %119, %120 : vector<8x8xi1>, vector<8x8xf32>
    %cst_66 = arith.constant dense<0xFF800000> : vector<8xf32>
    %122 = vector.multi_reduction <maximumf>, %121, %cst_66 [1] : vector<8x8xf32> to vector<8xf32>
    %123 = vector.shape_cast %122 : vector<8xf32> to vector<8x1xf32>
    %124 = vector.broadcast %123 : vector<8x1xf32> to vector<8x8xf32>
    %125 = arith.subf %121, %124 : vector<8x8xf32>
    %126 = math.exp %125 : vector<8x8xf32>
    %cst_67 = arith.constant dense<0.000000e+00> : vector<8xf32>
    %127 = vector.multi_reduction <add>, %126, %cst_67 [1] : vector<8x8xf32> to vector<8xf32>
    %128 = vector.shape_cast %127 : vector<8xf32> to vector<8x1xf32>
    %129 = tpu.reciprocal %128 : vector<8x1xf32> -> vector<8x1xf32>
    %130 = vector.broadcast %129 : vector<8x1xf32> to vector<8x8xf32>
    %131 = arith.mulf %126, %130 : vector<8x8xf32>
    %cst_68 = arith.constant dense<0.000000e+00> : vector<8x16xf32>
    %132 = tpu.matmul %131, %116, %cst_68 {dimension_numbers = #tpu.dot_dimension_numbers<[1], [0], [0], [1], [0, 0, 1, 1], [], []>} : vector<8x8xf32>, vector<8x16xf32>, vector<8x16xf32> -> vector<8x16xf32>
    %c0_69 = arith.constant 0 : index
    %c0_70 = arith.constant 0 : index
    %133 = vector.load %arg25[%c0_69, %c0_70] : memref<8x32xf32, #tpu.memory_space<vmem>>, vector<8x16xf32>
    tpu.vector_store %arg25[%c0_69, %c0_70], %132 {strides = array<i32>} : memref<8x32xf32, #tpu.memory_space<vmem>>, vector<8x16xf32>,
    %134 = vector.extract_strided_slice %111 {offsets = [0, 16], sizes = [8, 16], strides = [1, 1]} : vector<8x32xf32> to vector<8x16xf32>
    %c0_71 = arith.constant 0 : index
    %c16_72 = arith.constant 16 : index
    %135 = vector.load %arg22[%c0_71, %c16_72] : memref<8x32xf32, #tpu.memory_space<vmem>>, vector<8x16xf32>
    %c0_73 = arith.constant 0 : index
    %c16_74 = arith.constant 16 : index
    %136 = vector.load %arg23[%c0_73, %c16_74] : memref<8x32xf32, #tpu.memory_space<vmem>>, vector<8x16xf32>
    %cst_75 = arith.constant dense<0.000000e+00> : vector<8x8xf32>
    %137 = tpu.matmul %134, %135, %cst_75 {dimension_numbers = #tpu.dot_dimension_numbers<[1], [1], [0], [0], [0, 0, 1, 0], [], []>} : vector<8x16xf32>, vector<8x16xf32>, vector<8x8xf32> -> vector<8x8xf32>
    %cst_76 = arith.constant 2.500000e-01 : f32
    %138 = vector.broadcast %cst_76 : f32 to vector<8x8xf32>
    %139 = arith.mulf %137, %138 : vector<8x8xf32>
    %cst_77 = arith.constant -1.000000e+09 : f32
    %140 = vector.broadcast %cst_77 : f32 to vector<8x8xf32>
    %141 = arith.select %113, %139, %140 : vector<8x8xi1>, vector<8x8xf32>
    %cst_78 = arith.constant dense<0xFF800000> : vector<8xf32>
    %142 = vector.multi_reduction <maximumf>, %141, %cst_78 [1] : vector<8x8xf32> to vector<8xf32>
    %143 = vector.shape_cast %142 : vector<8xf32> to vector<8x1xf32>
    %144 = vector.broadcast %143 : vector<8x1xf32> to vector<8x8xf32>
    %145 = arith.subf %141, %144 : vector<8x8xf32>
    %146 = math.exp %145 : vector<8x8xf32>
    %cst_79 = arith.constant dense<0.000000e+00> : vector<8xf32>
    %147 = vector.multi_reduction <add>, %146, %cst_79 [1] : vector<8x8xf32> to vector<8xf32>
    %148 = vector.shape_cast %147 : vector<8xf32> to vector<8x1xf32>
    %149 = tpu.reciprocal %148 : vector<8x1xf32> -> vector<8x1xf32>
    %150 = vector.broadcast %149 : vector<8x1xf32> to vector<8x8xf32>
    %151 = arith.mulf %146, %150 : vector<8x8xf32>
    %cst_80 = arith.constant dense<0.000000e+00> : vector<8x16xf32>
    %152 = tpu.matmul %151, %136, %cst_80 {dimension_numbers = #tpu.dot_dimension_numbers<[1], [0], [0], [1], [0, 0, 1, 1], [], []>} : vector<8x8xf32>, vector<8x16xf32>, vector<8x16xf32> -> vector<8x16xf32>
    %c0_81 = arith.constant 0 : index
    %c16_82 = arith.constant 16 : index
    %153 = vector.load %arg25[%c0_81, %c16_82] : memref<8x32xf32, #tpu.memory_space<vmem>>, vector<8x16xf32>
    tpu.vector_store %arg25[%c0_81, %c16_82], %152 {strides = array<i32>} : memref<8x32xf32, #tpu.memory_space<vmem>>, vector<8x16xf32>,
    %c0_83 = arith.constant 0 : index
    %c0_84 = arith.constant 0 : index
    %154 = vector.load %arg25[%c0_83, %c0_84] : memref<8x32xf32, #tpu.memory_space<vmem>>, vector<8x32xf32>
    %c0_85 = arith.constant 0 : index
    %c0_86 = arith.constant 0 : index
    %155 = vector.load %arg13[%c0_85, %c0_86] : memref<32x32xf32, #tpu.memory_space<vmem>>, vector<32x32xf32>
    %cst_87 = arith.constant dense<0.000000e+00> : vector<8x32xf32>
    %156 = tpu.matmul %154, %155, %cst_87 {dimension_numbers = #tpu.dot_dimension_numbers<[1], [0], [0], [1], [0, 0, 1, 1], [], []>} : vector<8x32xf32>, vector<32x32xf32>, vector<8x32xf32> -> vector<8x32xf32>
    %157 = arith.addf %84, %156 : vector<8x32xf32>
    %c2 = arith.constant 2 : index
    %c0_88 = arith.constant 0 : index
    %158 = memref.load %arg18[%c2, %c0_88] : memref<3x2xf32, #tpu.memory_space<smem>>
    %c2_89 = arith.constant 2 : index
    %c1_90 = arith.constant 1 : index
    %159 = memref.load %arg18[%c2_89, %c1_90] : memref<3x2xf32, #tpu.memory_space<smem>>
    %cst_91 = arith.constant dense<0.000000e+00> : vector<8xf32>
    %160 = vector.multi_reduction <add>, %157, %cst_91 [1] : vector<8x32xf32> to vector<8xf32>
    %161 = vector.shape_cast %160 : vector<8xf32> to vector<8x1xf32>
    %cst_92 = arith.constant 3.200000e+01 : f32
    %162 = vector.broadcast %cst_92 : f32 to vector<8x1xf32>
    %163 = arith.divf %161, %162 : vector<8x1xf32>
    %164 = vector.broadcast %163 : vector<8x1xf32> to vector<8x32xf32>
    %165 = arith.subf %157, %164 : vector<8x32xf32>
    %166 = arith.mulf %165, %165 : vector<8x32xf32>
    %cst_93 = arith.constant dense<0.000000e+00> : vector<8xf32>
    %167 = vector.multi_reduction <add>, %166, %cst_93 [1] : vector<8x32xf32> to vector<8xf32>
    %168 = vector.shape_cast %167 : vector<8xf32> to vector<8x1xf32>
    %cst_94 = arith.constant 0.0322580636 : f32
    %169 = vector.broadcast %cst_94 : f32 to vector<8x1xf32>
    %170 = arith.mulf %168, %169 : vector<8x1xf32>
    %171 = math.sqrt %170 : vector<8x1xf32>
    %cst_95 = arith.constant 9.99999997E-7 : f32
    %172 = vector.broadcast %cst_95 : f32 to vector<8x1xf32>
    %173 = arith.addf %171, %172 : vector<8x1xf32>
    %174 = tpu.reciprocal %173 : vector<8x1xf32> -> vector<8x1xf32>
    %175 = vector.broadcast %163 : vector<8x1xf32> to vector<8x32xf32>
    %176 = arith.subf %157, %175 : vector<8x32xf32>
    %177 = vector.broadcast %158 : f32 to vector<8x32xf32>
    %178 = arith.mulf %177, %176 : vector<8x32xf32>
    %179 = vector.broadcast %174 : vector<8x1xf32> to vector<8x32xf32>
    %180 = arith.mulf %178, %179 : vector<8x32xf32>
    %181 = vector.broadcast %159 : f32 to vector<8x32xf32>
    %182 = arith.addf %180, %181 : vector<8x32xf32>
    %c0_96 = arith.constant 0 : index
    %c0_97 = arith.constant 0 : index
    %183 = vector.load %arg14[%c0_96, %c0_97] : memref<32x64xf32, #tpu.memory_space<vmem>>, vector<32x64xf32>
    %cst_98 = arith.constant dense<0.000000e+00> : vector<8x64xf32>
    %184 = tpu.matmul %182, %183, %cst_98 {dimension_numbers = #tpu.dot_dimension_numbers<[1], [0], [0], [1], [0, 0, 1, 1], [], []>} : vector<8x32xf32>, vector<32x64xf32>, vector<8x64xf32> -> vector<8x64xf32>
    %c0_99 = arith.constant 0 : index
    %c0_100 = arith.constant 0 : index
    %185 = vector.load %arg15[%c0_99, %c0_100] : memref<1x64xf32, #tpu.memory_space<vmem>>, vector<1x64xf32>
    %186 = vector.broadcast %185 : vector<1x64xf32> to vector<8x64xf32>
    %187 = arith.addf %184, %186 : vector<8x64xf32>
    %cst_101 = arith.constant 0.000000e+00 : f32
    %188 = vector.broadcast %cst_101 : f32 to vector<8x64xf32>
    %189 = arith.maximumf %187, %188 : vector<8x64xf32>
    %c0_102 = arith.constant 0 : index
    %c0_103 = arith.constant 0 : index
    %190 = vector.load %arg16[%c0_102, %c0_103] : memref<64x32xf32, #tpu.memory_space<vmem>>, vector<64x32xf32>
    %cst_104 = arith.constant dense<0.000000e+00> : vector<8x32xf32>
    %191 = tpu.matmul %189, %190, %cst_104 {dimension_numbers = #tpu.dot_dimension_numbers<[1], [0], [0], [1], [0, 0, 1, 1], [], []>} : vector<8x64xf32>, vector<64x32xf32>, vector<8x32xf32> -> vector<8x32xf32>
    %c0_105 = arith.constant 0 : index
    %c0_106 = arith.constant 0 : index
    %192 = vector.load %arg17[%c0_105, %c0_106] : memref<1x32xf32, #tpu.memory_space<vmem>>, vector<1x32xf32>
    %193 = vector.broadcast %192 : vector<1x32xf32> to vector<8x32xf32>
    %194 = arith.addf %191, %193 : vector<8x32xf32>
    %195 = arith.addf %157, %194 : vector<8x32xf32>
    %c0_107 = arith.constant 0 : index
    %c0_108 = arith.constant 0 : index
    %c0_109 = arith.constant 0 : index
    %196 = vector.load %arg19[%c0_107, %c0_108, %c0_109] : memref<1x8x32xf32, #tpu.memory_space<vmem>>, vector<1x8x32xf32>
    %197 = vector.shape_cast %196 : vector<1x8x32xf32> to vector<8x32xf32>
    %198 = vector.shape_cast %195 : vector<8x32xf32> to vector<1x8x32xf32>
    tpu.vector_store %arg19[%c0_107, %c0_108, %c0_109], %198 {strides = array<i32>} : memref<1x8x32xf32, #tpu.memory_space<vmem>>, vector<1x8x32xf32>,
    return
  }
  func.func @transform_0(%arg0: i32, %arg1: i32) -> (i32, i32, i32) {
    %c0_i32 = arith.constant 0 : i32
    %c0_i32_0 = arith.constant 0 : i32
    %c0_i32_1 = arith.constant 0 : i32
    return %arg0, %c0_i32, %c0_i32_0 : i32, i32, i32
  }
  func.func @transform_1(%arg0: i32, %arg1: i32) -> (i32, i32, i32) {
    %c0_i32 = arith.constant 0 : i32
    %c0_i32_0 = arith.constant 0 : i32
    %c0_i32_1 = arith.constant 0 : i32
    return %arg0, %c0_i32, %c0_i32_0 : i32, i32, i32
  }
  func.func @transform_2(%arg0: i32, %arg1: i32) -> (i32, i32, i32) {
    %c0_i32 = arith.constant 0 : i32
    %c0_i32_0 = arith.constant 0 : i32
    return %arg0, %arg1, %c0_i32 : i32, i32, i32
  }
  func.func @transform_3(%arg0: i32, %arg1: i32) -> (i32, i32, i32) {
    %c0_i32 = arith.constant 0 : i32
    %c0_i32_0 = arith.constant 0 : i32
    return %arg0, %arg1, %c0_i32 : i32, i32, i32
  }
  func.func @transform_4(%arg0: i32, %arg1: i32) -> (i32, i32) {
    %c0_i32 = arith.constant 0 : i32
    %c0_i32_0 = arith.constant 0 : i32
    %c0_i32_1 = arith.constant 0 : i32
    return %c0_i32, %c0_i32_0 : i32, i32
  }
  func.func @transform_5(%arg0: i32, %arg1: i32) -> (i32, i32) {
    %c0_i32 = arith.constant 0 : i32
    %c0_i32_0 = arith.constant 0 : i32
    %c0_i32_1 = arith.constant 0 : i32
    return %c0_i32, %c0_i32_0 : i32, i32
  }
  func.func @transform_6(%arg0: i32, %arg1: i32) -> (i32, i32) {
    %c0_i32 = arith.constant 0 : i32
    %c0_i32_0 = arith.constant 0 : i32
    %c0_i32_1 = arith.constant 0 : i32
    return %c0_i32, %c0_i32_0 : i32, i32
  }
  func.func @transform_7(%arg0: i32, %arg1: i32) -> (i32, i32) {
    %c0_i32 = arith.constant 0 : i32
    %c0_i32_0 = arith.constant 0 : i32
    %c0_i32_1 = arith.constant 0 : i32
    return %c0_i32, %c0_i32_0 : i32, i32
  }
  func.func @transform_8(%arg0: i32, %arg1: i32) -> (i32, i32) {
    %c0_i32 = arith.constant 0 : i32
    %c0_i32_0 = arith.constant 0 : i32
    %c0_i32_1 = arith.constant 0 : i32
    return %c0_i32, %c0_i32_0 : i32, i32
  }
  func.func @transform_9(%arg0: i32, %arg1: i32) -> (i32, i32) {
    %c0_i32 = arith.constant 0 : i32
    %c0_i32_0 = arith.constant 0 : i32
    %c0_i32_1 = arith.constant 0 : i32
    return %c0_i32, %c0_i32_0 : i32, i32
  }
  func.func @transform_10(%arg0: i32, %arg1: i32) -> (i32, i32) {
    %c0_i32 = arith.constant 0 : i32
    %c0_i32_0 = arith.constant 0 : i32
    %c0_i32_1 = arith.constant 0 : i32
    return %c0_i32, %c0_i32_0 : i32, i32
  }
  func.func @transform_11(%arg0: i32, %arg1: i32) -> (i32, i32) {
    %c0_i32 = arith.constant 0 : i32
    %c0_i32_0 = arith.constant 0 : i32
    %c0_i32_1 = arith.constant 0 : i32
    return %c0_i32, %c0_i32_0 : i32, i32
  }
  func.func @transform_12(%arg0: i32, %arg1: i32) -> (i32, i32) {
    %c0_i32 = arith.constant 0 : i32
    %c0_i32_0 = arith.constant 0 : i32
    %c0_i32_1 = arith.constant 0 : i32
    return %c0_i32, %c0_i32_0 : i32, i32
  }
  func.func @transform_13(%arg0: i32, %arg1: i32) -> (i32, i32) {
    %c0_i32 = arith.constant 0 : i32
    %c0_i32_0 = arith.constant 0 : i32
    %c0_i32_1 = arith.constant 0 : i32
    return %c0_i32, %c0_i32_0 : i32, i32
  }
  func.func @transform_14(%arg0: i32, %arg1: i32) -> (i32, i32) {
    %c0_i32 = arith.constant 0 : i32
    %c0_i32_0 = arith.constant 0 : i32
    %c0_i32_1 = arith.constant 0 : i32
    return %c0_i32, %c0_i32_0 : i32, i32
  }
  func.func @transform_15(%arg0: i32, %arg1: i32) -> (i32, i32) {
    %c0_i32 = arith.constant 0 : i32
    %c0_i32_0 = arith.constant 0 : i32
    %c0_i32_1 = arith.constant 0 : i32
    return %c0_i32, %c0_i32_0 : i32, i32
  }
  func.func @transform_16(%arg0: i32, %arg1: i32) -> (i32, i32) {
    %c0_i32 = arith.constant 0 : i32
    %c0_i32_0 = arith.constant 0 : i32
    %c0_i32_1 = arith.constant 0 : i32
    return %c0_i32, %c0_i32_0 : i32, i32
  }
  func.func @transform_17(%arg0: i32, %arg1: i32) -> (i32, i32, i32) {
    %c0_i32 = arith.constant 0 : i32
    %c0_i32_0 = arith.constant 0 : i32
    return %arg0, %arg1, %c0_i32 : i32, i32, i32
  }
}

</mosaic_0001>

<llo_original>
// kernel: tpu_custom_call.1
$region0: #{tpu_custom_call.1}
  #allocation0 [shape = 'u32[]', space=smem, size = 0x4, offset = 0x4, fixed_abs, tag = 'smem constant byte address 0x4 - core index']
  #allocation1 [shape = 'u32[72,128]{1,0:T(1,128)}', space=vmem, size = 0x9000, scoped, tag = 'internal scratch']
  #allocation2 [shape = 'f32[8,32]{1,0:T(8,128)}', space=vmem, size = 0x1000, scoped, tag = 'scratch operand']
  #allocation3 [shape = 'f32[8,32]{1,0:T(8,128)}', space=vmem, size = 0x1000, scoped, tag = 'scratch operand']
  #allocation4 [shape = 'f32[8,32]{1,0:T(8,128)}', space=vmem, size = 0x1000, scoped, tag = 'scratch operand']
  #allocation5 [shape = 'f32[8,32]{1,0:T(8,128)}', space=vmem, size = 0x1000, scoped, tag = 'scratch operand']
  #allocation6 [shape = 'f32[8,32]{1,0:T(8,128)}', space=vmem, size = 0x1000, scoped, tag = 'scratch operand']
  #allocation7 [shape = 'f32[8,32]{1,0:T(8,128)}', space=vmem, size = 0x1000, scoped, tag = 'scratch operand']
  %s0 = inlined_call_operand.hbm [shape: f32[2,8,32], index: 0, kind: input, shape index: {}]
  %s1 = inlined_call_operand.hbm [shape: f32[2,8,32], index: 1, kind: input, shape index: {}]
  %s2 = inlined_call_operand.vmem [shape: s8[2,8,8], index: 2, kind: input, shape index: {}]
  %s3 = inlined_call_operand.hbm [shape: s8[2,8,8], index: 3, kind: input, shape index: {}]
  %s4 = inlined_call_operand.vmem [shape: f32[32,32], index: 4, kind: input, shape index: {}]
  %s5 = inlined_call_operand.vmem [shape: f32[32,32], index: 5, kind: input, shape index: {}]
  %s6 = inlined_call_operand.vmem [shape: f32[32,32], index: 6, kind: input, shape index: {}]
  %s7 = inlined_call_operand.hbm [shape: f32[32,32], index: 7, kind: input, shape index: {}]
  %s8 = inlined_call_operand.hbm [shape: f32[32,32], index: 8, kind: input, shape index: {}]
  %s9 = inlined_call_operand.hbm [shape: f32[32,32], index: 9, kind: input, shape index: {}]
  %s10 = inlined_call_operand.hbm [shape: f32[32,32], index: 10, kind: input, shape index: {}]
  %s11 = inlined_call_operand.hbm [shape: f32[32,32], index: 11, kind: input, shape index: {}]
  %s12 = inlined_call_operand.hbm [shape: f32[32,64], index: 12, kind: input, shape index: {}]
  %s13 = inlined_call_operand.vmem [shape: f32[1,64], index: 13, kind: input, shape index: {}]
  %s14 = inlined_call_operand.vmem [shape: f32[64,32], index: 14, kind: input, shape index: {}]
  %s15 = inlined_call_operand.vmem [shape: f32[1,32], index: 15, kind: input, shape index: {}]
  %s16 = inlined_call_operand.vmem [shape: f32[3,2], index: 16, kind: input, shape index: {}]
  %s17 = inlined_call_operand.hbm [shape: f32[2,8,32], index: 17, kind: output, shape index: {}]
  %s18 = sld [smem:[#allocation0]]
  $region145: #{tpu_custom_call.1} parent=0
    _
  %s20 = ssub.s32 1, %s18
  %s21 = scalar_select 0, %s20, %s18
  $region1: #{tpu_custom_call.1} parent=0
    #allocation8 [shape = 'u8[8192]{0}', space=vmem, size = 0x2000, scoped, tag = 'input window, operand 0']
    #allocation9 [shape = 's32[2]{0}', space=sflag, size = 0x8, scoped, tag = 'scoped memory for tpu_custom_call.1']
    #allocation10 [shape = 's32[2]{0}', space=sflag, size = 0x8, scoped, tag = 'scoped memory for tpu_custom_call.1']
    #allocation11 [shape = 's32[2]{0}', space=sflag, size = 0x8, scoped, tag = 'scoped memory for tpu_custom_call.1']
    #allocation12 [shape = 'u8[8192]{0}', space=vmem, size = 0x2000, scoped, tag = 'input window, operand 1']
    #allocation13 [shape = 's32[2]{0}', space=sflag, size = 0x8, scoped, tag = 'scoped memory for tpu_custom_call.1']
    #allocation14 [shape = 'u8[2048]{0}', space=vmem, size = 0x800, scoped, tag = 'input window, operand 3']
    #allocation15 [shape = 'u8[16384]{0}', space=vmem, size = 0x4000, scoped, tag = 'input window, operand 7, single buffered']
    #allocation16 [shape = 's32[1]{0}', space=sflag, size = 0x4, scoped, tag = 'scoped memory for tpu_custom_call.1']
    #allocation17 [shape = 'u8[16384]{0}', space=vmem, size = 0x4000, scoped, tag = 'input window, operand 8, single buffered']
    #allocation18 [shape = 'u8[16384]{0}', space=vmem, size = 0x4000, scoped, tag = 'input window, operand 9, single buffered']
    #allocation19 [shape = 's32[1]{0}', space=sflag, size = 0x4, scoped, tag = 'scoped memory for tpu_custom_call.1']
    #allocation20 [shape = 'u8[16384]{0}', space=vmem, size = 0x4000, scoped, tag = 'input window, operand 10, single buffered']
    #allocation21 [shape = 'u8[16384]{0}', space=vmem, size = 0x4000, scoped, tag = 'input window, operand 11, single buffered']
    #allocation22 [shape = 's32[1]{0}', space=sflag, size = 0x4, scoped, tag = 'scoped memory for tpu_custom_call.1']
    #allocation23 [shape = 'u8[16384]{0}', space=vmem, size = 0x4000, scoped, tag = 'input window, operand 12, single buffered']
    #allocation24 [shape = 'u8[2048]{0}', space=smem, size = 0x800, scoped, tag = 'input window, operand 16, single buffered']
    #allocation25 [shape = 'u8[8192]{0}', space=vmem, size = 0x2000, scoped, tag = 'output window, operand 0']
    %22 = vsyncpa [#allocation9], 0
    %s23 = scalar_lea.sflag [#allocation9], 1
    %24 = vsyncpa %s23, 0
    %25 = vsyncpa [#allocation13], 0
    %s26 = scalar_lea.sflag [#allocation13], 1
    %27 = vsyncpa %s26, 0
    %28 = vsyncpa [#allocation16], 0
    %29 = vsyncpa [#allocation19], 0
    %30 = vsyncpa [#allocation22], 0
    %31 = vsyncpa [#allocation11], 0
    %32 = vsyncpa [#allocation10], 0
    %s33 = scalar_lea.sflag [#allocation10], 1
    %34 = vsyncpa %s33, 0
    loop: start=0, step=1, limit=4
    $region2: #{tpu_custom_call.1} parent=1 // loop_pre_header
      _
    $region3: #{tpu_custom_call.1} parent=1 // loop_header
      %s36 = sphi 0, %s40
      %p37 = scmp.ge.s32.totalorder %s36, 4
      %s43 = sphi 0, %s55
      %s44 = sphi 0, %s51
      %s45 = sphi 0, %s43
      %s46 = sphi 0, %s44
      %s47 = sphi 0, %s45
      %s48 = sphi 0, %s46
      %s58 = sphi 0, %s60
      %s61 = sphi 0, %s58
      %s62 = sphi 0, %s61
      %s78 = sphi 0, %s62
      %s84 = sphi 0, %s86
      %s87 = sphi 0, %s84
      %s88 = sphi 0, %s87
      %s104 = sphi 0, %s88
      %s112 = sphi 0, %s114
      %s115 = sphi 0, %s112
      %s116 = sphi 0, %s115
      %s132 = sphi 0, %s116
      %s140 = sphi 0, %s142
      %s143 = sphi 0, %s140
      %s144 = sphi 0, %s143
      %s160 = sphi 0, %s144
      %s164 = sphi 0, %s164
      %s166 = sphi 0, %s164
      %s167 = sphi 0, %s166
      %s181 = sphi 0, %s167
      %s185 = sphi 0, %s185
      %s187 = sphi 0, %s185
      %s188 = sphi 0, %s187
      %s202 = sphi 0, %s188
      %s206 = sphi 0, %s206
      %s208 = sphi 0, %s206
      %s209 = sphi 0, %s208
      %s223 = sphi 0, %s209
      %s227 = sphi 0, %s227
      %s229 = sphi 0, %s227
      %s230 = sphi 0, %s229
      %s244 = sphi 0, %s230
      %s248 = sphi 0, %s248
      %s250 = sphi 0, %s248
      %s251 = sphi 0, %s250
      %s265 = sphi 0, %s251
      %s269 = sphi 0, %s269
      %s271 = sphi 0, %s269
      %s272 = sphi 0, %s271
      %s286 = sphi 0, %s272
      %s290 = sphi 0, %s290
      %s292 = sphi 0, %s290
      %s293 = sphi 0, %s292
      %s307 = sphi 0, %s293
      %s311 = sphi 0, %s311
      %s313 = sphi 0, %s311
      %s314 = sphi 0, %s313
      %s328 = sphi 0, %s314
      %s332 = sphi 0, %s332
      %s334 = sphi 0, %s332
      %s335 = sphi 0, %s334
      %s349 = sphi 0, %s335
      %s353 = sphi 0, %s353
      %s355 = sphi 0, %s353
      %s356 = sphi 0, %s355
      %s370 = sphi 0, %s356
      %s374 = sphi 0, %s374
      %s376 = sphi 0, %s374
      %s377 = sphi 0, %s376
      %s391 = sphi 0, %s377
      %s395 = sphi 0, %s395
      %s397 = sphi 0, %s395
      %s398 = sphi 0, %s397
      %s412 = sphi 0, %s398
      %s416 = sphi 0, %s416
      %s418 = sphi 0, %s416
      %s419 = sphi 0, %s418
      %s433 = sphi 0, %s419
      %s441 = sphi 0, %s443
      %s444 = sphi 0, %s441
      %s445 = sphi 0, %s444
      %s461 = sphi 0, %s445
    $region4: #{tpu_custom_call.1} parent=1 // loop_header_branch
      %39 = sbr.rel (%p37) target = $region8
    $region5: #{tpu_custom_call.1} parent=1 // loop_body
      %s41 = ssub.s32 %s36, 1
      %s42 = ssub.s32 %s36, 2
      %s49 = sadd.s32 1, %s44
      %p50 = scmp.ge.s32.totalorder %s49, 1
      %s51 = scalar_select %p50, 0, %s49
      %s52 = sadd.s32 1, %s43
      %s53 = scalar_select %p50, %s52, %s43
      %p54 = scmp.ge.s32.totalorder %s53, 2
      %s55 = scalar_select %p54, 0, %s53
      %s56 = ssub.s32 %s43, %s55
      %p57 = scmp.eq.s32.totalorder %s56, 0
      %s59 = sadd.s32 %s58, 1
      %s60 = scalar_select %p57, %s58, %s59
      %p63 = pneg %p57
      %p64 = scmp.eq.s32.totalorder %s36, 1
      %p65 = por %p63, %p64
      %p66 = scmp.ne.s32.totalorder %s58, %s61
      %p67 = scmp.eq.s32.totalorder %s36, 0
      %p68 = por %p66, %p67
      %p69 = scmp.ne.s32.totalorder %s58, %s61
      %p70 = scmp.eq.s32.totalorder %s41, 1
      %p71 = por %p69, %p70
      %p72 = scmp.ne.s32.totalorder %s61, %s62
      %p73 = scmp.eq.s32.totalorder %s41, 0
      %p74 = por %p72, %p73
      %p75 = scmp.ne.s32.totalorder %s61, %s62
      %p76 = scmp.eq.s32.totalorder %s42, 1
      %p77 = por %p75, %p76
      %p79 = scmp.ne.s32.totalorder %s62, %s78
      %p80 = scmp.eq.s32.totalorder %s42, 0
      %p81 = por %p79, %p80
      %s82 = ssub.s32 %s43, %s55
      %p83 = scmp.eq.s32.totalorder %s82, 0
      %s85 = sadd.s32 %s84, 1
      %s86 = scalar_select %p83, %s84, %s85
      %p89 = pneg %p83
      %p90 = scmp.eq.s32.totalorder %s36, 1
      %p91 = por %p89, %p90
      %p92 = scmp.ne.s32.totalorder %s84, %s87
      %p93 = scmp.eq.s32.totalorder %s36, 0
      %p94 = por %p92, %p93
      %p95 = scmp.ne.s32.totalorder %s84, %s87
      %p96 = scmp.eq.s32.totalorder %s41, 1
      %p97 = por %p95, %p96
      %p98 = scmp.ne.s32.totalorder %s87, %s88
      %p99 = scmp.eq.s32.totalorder %s41, 0
      %p100 = por %p98, %p99
      %p101 = scmp.ne.s32.totalorder %s87, %s88
      %p102 = scmp.eq.s32.totalorder %s42, 1
      %p103 = por %p101, %p102
      %p105 = scmp.ne.s32.totalorder %s88, %s104
      %p106 = scmp.eq.s32.totalorder %s42, 0
      %p107 = por %p105, %p106
      %s108 = ssub.s32 %s43, %s55
      %s109 = ssub.s32 %s44, %s51
      %s110 = sor.u32 %s108, %s109
      %p111 = scmp.eq.s32.totalorder %s110, 0
      %s113 = sadd.s32 %s112, 1
      %s114 = scalar_select %p111, %s112, %s113
      %p117 = pneg %p111
      %p118 = scmp.eq.s32.totalorder %s36, 1
      %p119 = por %p117, %p118
      %p120 = scmp.ne.s32.totalorder %s112, %s115
      %p121 = scmp.eq.s32.totalorder %s36, 0
      %p122 = por %p120, %p121
      %p123 = scmp.ne.s32.totalorder %s112, %s115
      %p124 = scmp.eq.s32.totalorder %s41, 1
      %p125 = por %p123, %p124
      %p126 = scmp.ne.s32.totalorder %s115, %s116
      %p127 = scmp.eq.s32.totalorder %s41, 0
      %p128 = por %p126, %p127
      %p129 = scmp.ne.s32.totalorder %s115, %s116
      %p130 = scmp.eq.s32.totalorder %s42, 1
      %p131 = por %p129, %p130
      %p133 = scmp.ne.s32.totalorder %s116, %s132
      %p134 = scmp.eq.s32.totalorder %s42, 0
      %p135 = por %p133, %p134
      %s136 = ssub.s32 %s43, %s55
      %s137 = ssub.s32 %s44, %s51
      %s138 = sor.u32 %s136, %s137
      %p139 = scmp.eq.s32.totalorder %s138, 0
      %s141 = sadd.s32 %s140, 1
      %s142 = scalar_select %p139, %s140, %s141
      %p145 = pneg %p139
      %p146 = scmp.eq.s32.totalorder %s36, 1
      %p147 = por %p145, %p146
      %p148 = scmp.ne.s32.totalorder %s140, %s143
      %p149 = scmp.eq.s32.totalorder %s36, 0
      %p150 = por %p148, %p149
      %p151 = scmp.ne.s32.totalorder %s140, %s143
      %p152 = scmp.eq.s32.totalorder %s41, 1
      %p153 = por %p151, %p152
      %p154 = scmp.ne.s32.totalorder %s143, %s144
      %p155 = scmp.eq.s32.totalorder %s41, 0
      %p156 = por %p154, %p155
      %p157 = scmp.ne.s32.totalorder %s143, %s144
      %p158 = scmp.eq.s32.totalorder %s42, 1
      %p159 = por %p157, %p158
      %p161 = scmp.ne.s32.totalorder %s144, %s160
      %p162 = scmp.eq.s32.totalorder %s42, 0
      %p163 = por %p161, %p162
      %s165 = sadd.s32 %s164, 1
      %p168 = scmp.eq.s32.totalorder %s36, 1
      %p169 = scmp.ne.s32.totalorder %s164, %s166
      %p170 = scmp.eq.s32.totalorder %s36, 0
      %p171 = por %p169, %p170
      %p172 = scmp.ne.s32.totalorder %s164, %s166
      %p173 = scmp.eq.s32.totalorder %s41, 1
      %p174 = por %p172, %p173
      %p175 = scmp.ne.s32.totalorder %s166, %s167
      %p176 = scmp.eq.s32.totalorder %s41, 0
      %p177 = por %p175, %p176
      %p178 = scmp.ne.s32.totalorder %s166, %s167
      %p179 = scmp.eq.s32.totalorder %s42, 1
      %p180 = por %p178, %p179
      %p182 = scmp.ne.s32.totalorder %s167, %s181
      %p183 = scmp.eq.s32.totalorder %s42, 0
      %p184 = por %p182, %p183
      %s186 = sadd.s32 %s185, 1
      %p189 = scmp.eq.s32.totalorder %s36, 1
      %p190 = scmp.ne.s32.totalorder %s185, %s187
      %p191 = scmp.eq.s32.totalorder %s36, 0
      %p192 = por %p190, %p191
      %p193 = scmp.ne.s32.totalorder %s185, %s187
      %p194 = scmp.eq.s32.totalorder %s41, 1
      %p195 = por %p193, %p194
      %p196 = scmp.ne.s32.totalorder %s187, %s188
      %p197 = scmp.eq.s32.totalorder %s41, 0
      %p198 = por %p196, %p197
      %p199 = scmp.ne.s32.totalorder %s187, %s188
      %p200 = scmp.eq.s32.totalorder %s42, 1
      %p201 = por %p199, %p200
      %p203 = scmp.ne.s32.totalorder %s188, %s202
      %p204 = scmp.eq.s32.totalorder %s42, 0
      %p205 = por %p203, %p204
      %s207 = sadd.s32 %s206, 1
      %p210 = scmp.eq.s32.totalorder %s36, 1
      %p211 = scmp.ne.s32.totalorder %s206, %s208
      %p212 = scmp.eq.s32.totalorder %s36, 0
      %p213 = por %p211, %p212
      %p214 = scmp.ne.s32.totalorder %s206, %s208
      %p215 = scmp.eq.s32.totalorder %s41, 1
      %p216 = por %p214, %p215
      %p217 = scmp.ne.s32.totalorder %s208, %s209
      %p218 = scmp.eq.s32.totalorder %s41, 0
      %p219 = por %p217, %p218
      %p220 = scmp.ne.s32.totalorder %s208, %s209
      %p221 = scmp.eq.s32.totalorder %s42, 1
      %p222 = por %p220, %p221
      %p224 = scmp.ne.s32.totalorder %s209, %s223
      %p225 = scmp.eq.s32.totalorder %s42, 0
      %p226 = por %p224, %p225
      %s228 = sadd.s32 %s227, 1
      %p231 = scmp.eq.s32.totalorder %s36, 1
      %p232 = scmp.ne.s32.totalorder %s227, %s229
      %p233 = scmp.eq.s32.totalorder %s36, 0
      %p234 = por %p232, %p233
      %p235 = scmp.ne.s32.totalorder %s227, %s229
      %p236 = scmp.eq.s32.totalorder %s41, 1
      %p237 = por %p235, %p236
      %p238 = scmp.ne.s32.totalorder %s229, %s230
      %p239 = scmp.eq.s32.totalorder %s41, 0
      %p240 = por %p238, %p239
      %p241 = scmp.ne.s32.totalorder %s229, %s230
      %p242 = scmp.eq.s32.totalorder %s42, 1
      %p243 = por %p241, %p242
      %p245 = scmp.ne.s32.totalorder %s230, %s244
      %p246 = scmp.eq.s32.totalorder %s42, 0
      %p247 = por %p245, %p246
      %s249 = sadd.s32 %s248, 1
      %p252 = scmp.eq.s32.totalorder %s36, 1
      %p253 = scmp.ne.s32.totalorder %s248, %s250
      %p254 = scmp.eq.s32.totalorder %s36, 0
      %p255 = por %p253, %p254
      %p256 = scmp.ne.s32.totalorder %s248, %s250
      %p257 = scmp.eq.s32.totalorder %s41, 1
      %p258 = por %p256, %p257
      %p259 = scmp.ne.s32.totalorder %s250, %s251
      %p260 = scmp.eq.s32.totalorder %s41, 0
      %p261 = por %p259, %p260
      %p262 = scmp.ne.s32.totalorder %s250, %s251
      %p263 = scmp.eq.s32.totalorder %s42, 1
      %p264 = por %p262, %p263
      %p266 = scmp.ne.s32.totalorder %s251, %s265
      %p267 = scmp.eq.s32.totalorder %s42, 0
      %p268 = por %p266, %p267
      %s270 = sadd.s32 %s269, 1
      %p273 = scmp.eq.s32.totalorder %s36, 1
      %p274 = scmp.ne.s32.totalorder %s269, %s271
      %p275 = scmp.eq.s32.totalorder %s36, 0
      %p276 = por %p274, %p275
      %p277 = scmp.ne.s32.totalorder %s269, %s271
      %p278 = scmp.eq.s32.totalorder %s41, 1
      %p279 = por %p277, %p278
      %p280 = scmp.ne.s32.totalorder %s271, %s272
      %p281 = scmp.eq.s32.totalorder %s41, 0
      %p282 = por %p280, %p281
      %p283 = scmp.ne.s32.totalorder %s271, %s272
      %p284 = scmp.eq.s32.totalorder %s42, 1
      %p285 = por %p283, %p284
      %p287 = scmp.ne.s32.totalorder %s272, %s286
      %p288 = scmp.eq.s32.totalorder %s42, 0
      %p289 = por %p287, %p288
      %s291 = sadd.s32 %s290, 1
      %p294 = scmp.eq.s32.totalorder %s36, 1
      %p295 = scmp.ne.s32.totalorder %s290, %s292
      %p296 = scmp.eq.s32.totalorder %s36, 0
      %p297 = por %p295, %p296
      %p298 = scmp.ne.s32.totalorder %s290, %s292
      %p299 = scmp.eq.s32.totalorder %s41, 1
      %p300 = por %p298, %p299
      %p301 = scmp.ne.s32.totalorder %s292, %s293
      %p302 = scmp.eq.s32.totalorder %s41, 0
      %p303 = por %p301, %p302
      %p304 = scmp.ne.s32.totalorder %s292, %s293
      %p305 = scmp.eq.s32.totalorder %s42, 1
      %p306 = por %p304, %p305
      %p308 = scmp.ne.s32.totalorder %s293, %s307
      %p309 = scmp.eq.s32.totalorder %s42, 0
      %p310 = por %p308, %p309
      %s312 = sadd.s32 %s311, 1
      %p315 = scmp.eq.s32.totalorder %s36, 1
      %p316 = scmp.ne.s32.totalorder %s311, %s313
      %p317 = scmp.eq.s32.totalorder %s36, 0
      %p318 = por %p316, %p317
      %p319 = scmp.ne.s32.totalorder %s311, %s313
      %p320 = scmp.eq.s32.totalorder %s41, 1
      %p321 = por %p319, %p320
      %p322 = scmp.ne.s32.totalorder %s313, %s314
      %p323 = scmp.eq.s32.totalorder %s41, 0
      %p324 = por %p322, %p323
      %p325 = scmp.ne.s32.totalorder %s313, %s314
      %p326 = scmp.eq.s32.totalorder %s42, 1
      %p327 = por %p325, %p326
      %p329 = scmp.ne.s32.totalorder %s314, %s328
      %p330 = scmp.eq.s32.totalorder %s42, 0
      %p331 = por %p329, %p330
      %s333 = sadd.s32 %s332, 1
      %p336 = scmp.eq.s32.totalorder %s36, 1
      %p337 = scmp.ne.s32.totalorder %s332, %s334
      %p338 = scmp.eq.s32.totalorder %s36, 0
      %p339 = por %p337, %p338
      %p340 = scmp.ne.s32.totalorder %s332, %s334
      %p341 = scmp.eq.s32.totalorder %s41, 1
      %p342 = por %p340, %p341
      %p343 = scmp.ne.s32.totalorder %s334, %s335
      %p344 = scmp.eq.s32.totalorder %s41, 0
      %p345 = por %p343, %p344
      %p346 = scmp.ne.s32.totalorder %s334, %s335
      %p347 = scmp.eq.s32.totalorder %s42, 1
      %p348 = por %p346, %p347
      %p350 = scmp.ne.s32.totalorder %s335, %s349
      %p351 = scmp.eq.s32.totalorder %s42, 0
      %p352 = por %p350, %p351
      %s354 = sadd.s32 %s353, 1
      %p357 = scmp.eq.s32.totalorder %s36, 1
      %p358 = scmp.ne.s32.totalorder %s353, %s355
      %p359 = scmp.eq.s32.totalorder %s36, 0
      %p360 = por %p358, %p359
      %p361 = scmp.ne.s32.totalorder %s353, %s355
      %p362 = scmp.eq.s32.totalorder %s41, 1
      %p363 = por %p361, %p362
      %p364 = scmp.ne.s32.totalorder %s355, %s356
      %p365 = scmp.eq.s32.totalorder %s41, 0
      %p366 = por %p364, %p365
      %p367 = scmp.ne.s32.totalorder %s355, %s356
      %p368 = scmp.eq.s32.totalorder %s42, 1
      %p369 = por %p367, %p368
      %p371 = scmp.ne.s32.totalorder %s356, %s370
      %p372 = scmp.eq.s32.totalorder %s42, 0
      %p373 = por %p371, %p372
      %s375 = sadd.s32 %s374, 1
      %p378 = scmp.eq.s32.totalorder %s36, 1
      %p379 = scmp.ne.s32.totalorder %s374, %s376
      %p380 = scmp.eq.s32.totalorder %s36, 0
      %p381 = por %p379, %p380
      %p382 = scmp.ne.s32.totalorder %s374, %s376
      %p383 = scmp.eq.s32.totalorder %s41, 1
      %p384 = por %p382, %p383
      %p385 = scmp.ne.s32.totalorder %s376, %s377
      %p386 = scmp.eq.s32.totalorder %s41, 0
      %p387 = por %p385, %p386
      %p388 = scmp.ne.s32.totalorder %s376, %s377
      %p389 = scmp.eq.s32.totalorder %s42, 1
      %p390 = por %p388, %p389
      %p392 = scmp.ne.s32.totalorder %s377, %s391
      %p393 = scmp.eq.s32.totalorder %s42, 0
      %p394 = por %p392, %p393
      %s396 = sadd.s32 %s395, 1
      %p399 = scmp.eq.s32.totalorder %s36, 1
      %p400 = scmp.ne.s32.totalorder %s395, %s397
      %p401 = scmp.eq.s32.totalorder %s36, 0
      %p402 = por %p400, %p401
      %p403 = scmp.ne.s32.totalorder %s395, %s397
      %p404 = scmp.eq.s32.totalorder %s41, 1
      %p405 = por %p403, %p404
      %p406 = scmp.ne.s32.totalorder %s397, %s398
      %p407 = scmp.eq.s32.totalorder %s41, 0
      %p408 = por %p406, %p407
      %p409 = scmp.ne.s32.totalorder %s397, %s398
      %p410 = scmp.eq.s32.totalorder %s42, 1
      %p411 = por %p409, %p410
      %p413 = scmp.ne.s32.totalorder %s398, %s412
      %p414 = scmp.eq.s32.totalorder %s42, 0
      %p415 = por %p413, %p414
      %s417 = sadd.s32 %s416, 1
      %p420 = scmp.eq.s32.totalorder %s36, 1
      %p421 = scmp.ne.s32.totalorder %s416, %s418
      %p422 = scmp.eq.s32.totalorder %s36, 0
      %p423 = por %p421, %p422
      %p424 = scmp.ne.s32.totalorder %s416, %s418
      %p425 = scmp.eq.s32.totalorder %s41, 1
      %p426 = por %p424, %p425
      %p427 = scmp.ne.s32.totalorder %s418, %s419
      %p428 = scmp.eq.s32.totalorder %s41, 0
      %p429 = por %p427, %p428
      %p430 = scmp.ne.s32.totalorder %s418, %s419
      %p431 = scmp.eq.s32.totalorder %s42, 1
      %p432 = por %p430, %p431
      %p434 = scmp.ne.s32.totalorder %s419, %s433
      %p435 = scmp.eq.s32.totalorder %s42, 0
      %p436 = por %p434, %p435
      %s437 = ssub.s32 %s43, %s55
      %s438 = ssub.s32 %s44, %s51
      %s439 = sor.u32 %s437, %s438
      %p440 = scmp.eq.s32.totalorder %s439, 0
      %s442 = sadd.s32 %s441, 1
      %s443 = scalar_select %p440, %s441, %s442
      %p446 = pneg %p440
      %p447 = scmp.eq.s32.totalorder %s36, 1
      %p448 = por %p446, %p447
      %p449 = scmp.ne.s32.totalorder %s441, %s444
      %p450 = scmp.eq.s32.totalorder %s36, 0
      %p451 = por %p449, %p450
      %p452 = scmp.ne.s32.totalorder %s441, %s444
      %p453 = scmp.eq.s32.totalorder %s41, 1
      %p454 = por %p452, %p453
      %p455 = scmp.ne.s32.totalorder %s444, %s445
      %p456 = scmp.eq.s32.totalorder %s41, 0
      %p457 = por %p455, %p456
      %p458 = scmp.ne.s32.totalorder %s444, %s445
      %p459 = scmp.eq.s32.totalorder %s42, 1
      %p460 = por %p458, %p459
      %p462 = scmp.ne.s32.totalorder %s445, %s461
      %p463 = scmp.eq.s32.totalorder %s42, 0
      %p464 = por %p462, %p463
      %p465 = scmp.le.s32.totalorder 1, %s36
      %p466 = scmp.lt.s32.totalorder %s36, 3
      %p467 = pnand %p465, %p466
      %p468 = pneg %p467
      // Predicated region
      $region9: #{tpu_custom_call.1} parent=5 // pred_check
        _
      $region10: #{tpu_custom_call.1} parent=5 // pred_check_branch
        %470 = sbr.rel (%p467) target = $region12
      $region11: #{tpu_custom_call.1} parent=5 // pred_region
        %s471 = ssub.s32 %s36, 1
        // Predicated region
        $region13: #{tpu_custom_call.1} parent=11 // pred_check
          %p472 = pneg %p177
        $region14: #{tpu_custom_call.1} parent=11 // pred_check_branch
          %474 = sbr.rel (%p472) target = $region16
        $region15: #{tpu_custom_call.1} parent=11 // pred_region
          _
        $region16: #{tpu_custom_call.1} parent=11 // pred_fallthru
          _
        // Predicated region
        $region17: #{tpu_custom_call.1} parent=11 // pred_check
          %p475 = pneg %p198
        $region18: #{tpu_custom_call.1} parent=11 // pred_check_branch
          %477 = sbr.rel (%p475) target = $region20
        $region19: #{tpu_custom_call.1} parent=11 // pred_region
          _
        $region20: #{tpu_custom_call.1} parent=11 // pred_fallthru
          _
        // Predicated region
        $region21: #{tpu_custom_call.1} parent=11 // pred_check
          %p478 = pneg %p219
        $region22: #{tpu_custom_call.1} parent=11 // pred_check_branch
          %480 = sbr.rel (%p478) target = $region24
        $region23: #{tpu_custom_call.1} parent=11 // pred_region
          _
        $region24: #{tpu_custom_call.1} parent=11 // pred_fallthru
          _
        // Predicated region
        $region25: #{tpu_custom_call.1} parent=11 // pred_check
          %p481 = pneg %p240
        $region26: #{tpu_custom_call.1} parent=11 // pred_check_branch
          %483 = sbr.rel (%p481) target = $region28
        $region27: #{tpu_custom_call.1} parent=11 // pred_region
          %485 = vsyncadd [#allocation16], 0
          %s486 = sshll.u32 %s7, 4
          %s487 = int_to_ptr.hbm [resolvable:$true] %s486
          %s488 = sshll.u32 [#allocation15], 4
          %s489 = int_to_ptr.vmem [resolvable:$true] %s488
          %494 = dma.hbm_to_vmem [thread:$0]  %s487, 512, %s489, [#allocation16], 128, 128, 8
        $region28: #{tpu_custom_call.1} parent=11 // pred_fallthru
          _
        // Predicated region
        $region29: #{tpu_custom_call.1} parent=11 // pred_check
          %p495 = pneg %p261
        $region30: #{tpu_custom_call.1} parent=11 // pred_check_branch
          %497 = sbr.rel (%p495) target = $region32
        $region31: #{tpu_custom_call.1} parent=11 // pred_region
          %499 = vsyncadd [#allocation16], 0
          %s500 = sshll.u32 %s8, 4
          %s501 = int_to_ptr.hbm [resolvable:$true] %s500
          %s502 = sshll.u32 [#allocation17], 4
          %s503 = int_to_ptr.vmem [resolvable:$true] %s502
          %508 = dma.hbm_to_vmem [thread:$0]  %s501, 512, %s503, [#allocation16], 128, 128, 8
        $region32: #{tpu_custom_call.1} parent=11 // pred_fallthru
          _
        // Predicated region
        $region33: #{tpu_custom_call.1} parent=11 // pred_check
          %p509 = pneg %p282
        $region34: #{tpu_custom_call.1} parent=11 // pred_check_branch
          %511 = sbr.rel (%p509) target = $region36
        $region35: #{tpu_custom_call.1} parent=11 // pred_region
          %513 = vsyncadd [#allocation19], 0
          %s514 = sshll.u32 %s9, 4
          %s515 = int_to_ptr.hbm [resolvable:$true] %s514
          %s516 = sshll.u32 [#allocation18], 4
          %s517 = int_to_ptr.vmem [resolvable:$true] %s516
          %522 = dma.hbm_to_vmem [thread:$0]  %s515, 512, %s517, [#allocation19], 128, 128, 8
        $region36: #{tpu_custom_call.1} parent=11 // pred_fallthru
          _
        // Predicated region
        $region37: #{tpu_custom_call.1} parent=11 // pred_check
          %p523 = pneg %p303
        $region38: #{tpu_custom_call.1} parent=11 // pred_check_branch
          %525 = sbr.rel (%p523) target = $region40
        $region39: #{tpu_custom_call.1} parent=11 // pred_region
          %527 = vsyncadd [#allocation19], 0
          %s528 = sshll.u32 %s10, 4
          %s529 = int_to_ptr.hbm [resolvable:$true] %s528
          %s530 = sshll.u32 [#allocation20], 4
          %s531 = int_to_ptr.vmem [resolvable:$true] %s530
          %536 = dma.hbm_to_vmem [thread:$0]  %s529, 512, %s531, [#allocation19], 128, 128, 8
        $region40: #{tpu_custom_call.1} parent=11 // pred_fallthru
          _
        // Predicated region
        $region41: #{tpu_custom_call.1} parent=11 // pred_check
          %p537 = pneg %p324
        $region42: #{tpu_custom_call.1} parent=11 // pred_check_branch
          %539 = sbr.rel (%p537) target = $region44
        $region43: #{tpu_custom_call.1} parent=11 // pred_region
          %541 = vsyncadd [#allocation22], 0
          %s542 = sshll.u32 %s11, 4
          %s543 = int_to_ptr.hbm [resolvable:$true] %s542
          %s544 = sshll.u32 [#allocation21], 4
          %s545 = int_to_ptr.vmem [resolvable:$true] %s544
          %550 = dma.hbm_to_vmem [thread:$0]  %s543, 512, %s545, [#allocation22], 128, 128, 8
        $region44: #{tpu_custom_call.1} parent=11 // pred_fallthru
          _
        // Predicated region
        $region45: #{tpu_custom_call.1} parent=11 // pred_check
          %p551 = pneg %p345
        $region46: #{tpu_custom_call.1} parent=11 // pred_check_branch
          %553 = sbr.rel (%p551) target = $region48
        $region47: #{tpu_custom_call.1} parent=11 // pred_region
          %555 = vsyncadd [#allocation22], 0
          %s556 = sshll.u32 %s12, 4
          %s557 = int_to_ptr.hbm [resolvable:$true] %s556
          %s558 = sshll.u32 [#allocation23], 4
          %s559 = int_to_ptr.vmem [resolvable:$true] %s558
          %564 = dma.hbm_to_vmem [thread:$0]  %s557, 512, %s559, [#allocation22], 128, 128, 8
        $region48: #{tpu_custom_call.1} parent=11 // pred_fallthru
          _
        // Predicated region
        $region49: #{tpu_custom_call.1} parent=11 // pred_check
          %p565 = pneg %p366
        $region50: #{tpu_custom_call.1} parent=11 // pred_check_branch
          %567 = sbr.rel (%p565) target = $region52
        $region51: #{tpu_custom_call.1} parent=11 // pred_region
          _
        $region52: #{tpu_custom_call.1} parent=11 // pred_fallthru
          _
        // Predicated region
        $region53: #{tpu_custom_call.1} parent=11 // pred_check
          %p568 = pneg %p387
        $region54: #{tpu_custom_call.1} parent=11 // pred_check_branch
          %570 = sbr.rel (%p568) target = $region56
        $region55: #{tpu_custom_call.1} parent=11 // pred_region
          _
        $region56: #{tpu_custom_call.1} parent=11 // pred_fallthru
          _
        // Predicated region
        $region57: #{tpu_custom_call.1} parent=11 // pred_check
          %p571 = pneg %p408
        $region58: #{tpu_custom_call.1} parent=11 // pred_check_branch
          %573 = sbr.rel (%p571) target = $region60
        $region59: #{tpu_custom_call.1} parent=11 // pred_region
          _
        $region60: #{tpu_custom_call.1} parent=11 // pred_fallthru
          _
        // Predicated region
        $region61: #{tpu_custom_call.1} parent=11 // pred_check
          %p574 = pneg %p429
        $region62: #{tpu_custom_call.1} parent=11 // pred_check_branch
          %576 = sbr.rel (%p574) target = $region64
        $region63: #{tpu_custom_call.1} parent=11 // pred_region
          %578 = vsyncadd [#allocation11], 0
          %s580 = sshll.u32 %s16, 4
          %s581 = int_to_ptr.vmem [resolvable:$true] %s580
          %583 = dma.vmem_to_smem %s581, 64, [#allocation24], [#allocation11]
        $region64: #{tpu_custom_call.1} parent=11 // pred_fallthru
          _
      $region12: #{tpu_custom_call.1} parent=5 // pred_fallthru
        _
      %p584 = scmp.lt.s32.totalorder %s36, 2
      // Predicated region
      $region65: #{tpu_custom_call.1} parent=5 // pred_check
        %p585 = pneg %p584
      $region66: #{tpu_custom_call.1} parent=5 // pred_check_branch
        %587 = sbr.rel (%p585) target = $region68
      $region67: #{tpu_custom_call.1} parent=5 // pred_region
        // Predicated region
        $region69: #{tpu_custom_call.1} parent=67 // pred_check
          %p588 = pneg %p68
        $region70: #{tpu_custom_call.1} parent=67 // pred_check_branch
          %590 = sbr.rel (%p588) target = $region72
        $region71: #{tpu_custom_call.1} parent=67 // pred_region
          %s591 = sand.u32 %s58, 1
          %s592 = scalar_lea.sflag [#allocation9], %s591
          %s593 = sand.u32 %s58, 1
          %s594 = smul.addr %s593, 8
          %s595 = scalar_lea.vmem [#allocation8], %s594
          %597 = vsyncadd %s592, 0
          %s598 = smul.addr %s43, 8
          %s599 = scalar_lea.hbm %s0, %s598
          %s601 = sshll.u32 %s599, 4
          %s602 = int_to_ptr.hbm [resolvable:$true] %s601
          %s603 = sshll.u32 %s595, 4
          %s604 = int_to_ptr.vmem [resolvable:$true] %s603
          %606 = dma.hbm_to_vmem [thread:$0]  %s602, 128, %s604, %s592
        $region72: #{tpu_custom_call.1} parent=67 // pred_fallthru
          _
        // Predicated region
        $region73: #{tpu_custom_call.1} parent=67 // pred_check
          %p607 = pneg %p94
        $region74: #{tpu_custom_call.1} parent=67 // pred_check_branch
          %609 = sbr.rel (%p607) target = $region76
        $region75: #{tpu_custom_call.1} parent=67 // pred_region
          %s610 = sand.u32 %s36, 1
          %s611 = scalar_lea.sflag [#allocation13], %s610
          %s612 = sand.u32 %s84, 1
          %s613 = smul.addr %s612, 8
          %s614 = scalar_lea.vmem [#allocation12], %s613
          %616 = vsyncadd %s611, 0
          %s617 = smul.addr %s43, 8
          %s618 = scalar_lea.hbm %s1, %s617
          %s620 = sshll.u32 %s618, 4
          %s621 = int_to_ptr.hbm [resolvable:$true] %s620
          %s622 = sshll.u32 %s614, 4
          %s623 = int_to_ptr.vmem [resolvable:$true] %s622
          %625 = dma.hbm_to_vmem [thread:$0]  %s621, 128, %s623, %s611
        $region76: #{tpu_custom_call.1} parent=67 // pred_fallthru
          _
        // Predicated region
        $region77: #{tpu_custom_call.1} parent=67 // pred_check
          %p626 = pneg %p122
        $region78: #{tpu_custom_call.1} parent=67 // pred_check_branch
          %628 = sbr.rel (%p626) target = $region80
        $region79: #{tpu_custom_call.1} parent=67 // pred_region
          %p629 = scmp.lt.s32.totalorder %s43, 1
          %s630 = scalar_select %p629, %s43, 1
          %p631 = scmp.lt.s32.totalorder %s44, 0
          %s632 = scalar_select %p631, %s44, 0
          %s633 = sadd.s32 %s632, %s630
          %s634 = smul.addr %s633, 2
          %s635 = scalar_lea.vmem %s2, %s634
        $region80: #{tpu_custom_call.1} parent=67 // pred_fallthru
          _
        // Predicated region
        $region81: #{tpu_custom_call.1} parent=67 // pred_check
          %p636 = pneg %p150
        $region82: #{tpu_custom_call.1} parent=67 // pred_check_branch
          %638 = sbr.rel (%p636) target = $region84
        $region83: #{tpu_custom_call.1} parent=67 // pred_region
          %s639 = sand.u32 %s36, 1
          %s640 = scalar_lea.sflag [#allocation13], %s639
          %s641 = sand.u32 %s140, 1
          %s642 = smul.addr %s641, 2
          %s643 = scalar_lea.vmem [#allocation14], %s642
          %645 = vsyncadd %s640, 0
          %s646 = sadd.s32 %s44, %s43
          %s647 = smul.addr %s646, 2
          %s648 = scalar_lea.hbm %s3, %s647
          %s650 = sshll.u32 %s648, 4
          %s651 = int_to_ptr.hbm [resolvable:$true] %s650
          %s652 = sshll.u32 %s643, 4
          %s653 = int_to_ptr.vmem [resolvable:$true] %s652
          %655 = dma.hbm_to_vmem [thread:$0]  %s651, 32, %s653, %s640
        $region84: #{tpu_custom_call.1} parent=67 // pred_fallthru
          _
      $region68: #{tpu_custom_call.1} parent=5 // pred_fallthru
        _
      %p656 = scmp.le.s32.totalorder 1, %s36
      %p657 = scmp.lt.s32.totalorder %s36, 3
      %p658 = pnand %p656, %p657
      %p659 = pneg %p658
      // Predicated region
      $region85: #{tpu_custom_call.1} parent=5 // pred_check
        _
      $region86: #{tpu_custom_call.1} parent=5 // pred_check_branch
        %661 = sbr.rel (%p658) target = $region88
      $region87: #{tpu_custom_call.1} parent=5 // pred_region
        %s662 = ssub.s32 %s36, 1
        %s663 = sand.u32 %s61, 1
        %s664 = scalar_lea.sflag [#allocation9], %s663
        %s665 = sand.u32 %s61, 1
        %s666 = smul.addr %s665, 8
        %s667 = scalar_lea.vmem [#allocation8], %s666
        // Predicated region
        $region89: #{tpu_custom_call.1} parent=87 // pred_check
          %p668 = pneg %p74
        $region90: #{tpu_custom_call.1} parent=87 // pred_check_branch
          %670 = sbr.rel (%p668) target = $region92
        $region91: #{tpu_custom_call.1} parent=87 // pred_region
          %672 = dma.done %s664, 128
        $region92: #{tpu_custom_call.1} parent=87 // pred_fallthru
          _
        %s673 = sand.u32 %s41, 1
        %s674 = scalar_lea.sflag [#allocation13], %s673
        %s675 = sand.u32 %s87, 1
        %s676 = smul.addr %s675, 8
        %s677 = scalar_lea.vmem [#allocation12], %s676
        // Predicated region
        $region93: #{tpu_custom_call.1} parent=87 // pred_check
          %p678 = pneg %p100
        $region94: #{tpu_custom_call.1} parent=87 // pred_check_branch
          %680 = sbr.rel (%p678) target = $region96
        $region95: #{tpu_custom_call.1} parent=87 // pred_region
          %682 = dma.done %s674, 128
        $region96: #{tpu_custom_call.1} parent=87 // pred_fallthru
          _
        %s683 = sand.u32 %s41, 1
        %s684 = scalar_lea.sflag [#allocation13], %s683
        %s685 = sand.u32 %s143, 1
        %s686 = smul.addr %s685, 2
        %s687 = scalar_lea.vmem [#allocation14], %s686
        // Predicated region
        $region97: #{tpu_custom_call.1} parent=87 // pred_check
          %p688 = pneg %p156
        $region98: #{tpu_custom_call.1} parent=87 // pred_check_branch
          %690 = sbr.rel (%p688) target = $region100
        $region99: #{tpu_custom_call.1} parent=87 // pred_region
          %692 = dma.done %s684, 32
        $region100: #{tpu_custom_call.1} parent=87 // pred_fallthru
          _
        // Predicated region
        $region101: #{tpu_custom_call.1} parent=87 // pred_check
          %p693 = pneg %p240
        $region102: #{tpu_custom_call.1} parent=87 // pred_check_branch
          %695 = sbr.rel (%p693) target = $region104
        $region103: #{tpu_custom_call.1} parent=87 // pred_region
          %697 = dma.done [#allocation16], 512
        $region104: #{tpu_custom_call.1} parent=87 // pred_fallthru
          _
        // Predicated region
        $region105: #{tpu_custom_call.1} parent=87 // pred_check
          %p698 = pneg %p261
        $region106: #{tpu_custom_call.1} parent=87 // pred_check_branch
          %700 = sbr.rel (%p698) target = $region108
        $region107: #{tpu_custom_call.1} parent=87 // pred_region
          %702 = dma.done [#allocation16], 512
        $region108: #{tpu_custom_call.1} parent=87 // pred_fallthru
          _
        // Predicated region
        $region109: #{tpu_custom_call.1} parent=87 // pred_check
          %p703 = pneg %p282
        $region110: #{tpu_custom_call.1} parent=87 // pred_check_branch
          %705 = sbr.rel (%p703) target = $region112
        $region111: #{tpu_custom_call.1} parent=87 // pred_region
          %707 = dma.done [#allocation19], 512
        $region112: #{tpu_custom_call.1} parent=87 // pred_fallthru
          _
        // Predicated region
        $region113: #{tpu_custom_call.1} parent=87 // pred_check
          %p708 = pneg %p303
        $region114: #{tpu_custom_call.1} parent=87 // pred_check_branch
          %710 = sbr.rel (%p708) target = $region116
        $region115: #{tpu_custom_call.1} parent=87 // pred_region
          %712 = dma.done [#allocation19], 512
        $region116: #{tpu_custom_call.1} parent=87 // pred_fallthru
          _
        // Predicated region
        $region117: #{tpu_custom_call.1} parent=87 // pred_check
          %p713 = pneg %p324
        $region118: #{tpu_custom_call.1} parent=87 // pred_check_branch
          %715 = sbr.rel (%p713) target = $region120
        $region119: #{tpu_custom_call.1} parent=87 // pred_region
          %717 = dma.done [#allocation22], 512
        $region120: #{tpu_custom_call.1} parent=87 // pred_fallthru
          _
        // Predicated region
        $region121: #{tpu_custom_call.1} parent=87 // pred_check
          %p718 = pneg %p345
        $region122: #{tpu_custom_call.1} parent=87 // pred_check_branch
          %720 = sbr.rel (%p718) target = $region124
        $region123: #{tpu_custom_call.1} parent=87 // pred_region
          %722 = dma.done [#allocation22], 512
        $region124: #{tpu_custom_call.1} parent=87 // pred_fallthru
          _
        // Predicated region
        $region125: #{tpu_custom_call.1} parent=87 // pred_check
          %p723 = pneg %p429
        $region126: #{tpu_custom_call.1} parent=87 // pred_check_branch
          %725 = sbr.rel (%p723) target = $region128
        $region127: #{tpu_custom_call.1} parent=87 // pred_region
          %727 = dma.done [#allocation11], 64
        $region128: #{tpu_custom_call.1} parent=87 // pred_fallthru
          _
        %728 = sfence
        %s729 = sand.u32 %s61, 1
        %s730 = scalar_lea.sflag [#allocation9], %s729
        %s731 = sand.u32 %s61, 1
        %s732 = smul.addr %s731, 8
        %s733 = scalar_lea.vmem [#allocation8], %s732
        %p734 = pneg %p74
        %p735 = pneg %p71
        %s736 = sand.u32 %s41, 1
        %s737 = scalar_lea.sflag [#allocation13], %s736
        %s738 = sand.u32 %s87, 1
        %s739 = smul.addr %s738, 8
        %s740 = scalar_lea.vmem [#allocation12], %s739
        %p741 = pneg %p100
        %p742 = pneg %p97
        %p743 = scmp.lt.s32.totalorder %s45, 1
        %s744 = scalar_select %p743, %s45, 1
        %p745 = scmp.lt.s32.totalorder %s46, 0
        %s746 = scalar_select %p745, %s46, 0
        %s747 = sadd.s32 %s746, %s744
        %s748 = smul.addr %s747, 2
        %s749 = scalar_lea.vmem %s2, %s748
        %p750 = pneg %p128
        %p751 = pneg %p125
        %s752 = sand.u32 %s41, 1
        %s753 = scalar_lea.sflag [#allocation13], %s752
        %s754 = sand.u32 %s143, 1
        %s755 = smul.addr %s754, 2
        %s756 = scalar_lea.vmem [#allocation14], %s755
        %p757 = pneg %p156
        %p758 = pneg %p153
        %p759 = pneg %p177
        %p760 = pneg %p174
        %p761 = pneg %p198
        %p762 = pneg %p195
        %p763 = pneg %p219
        %p764 = pneg %p216
        %p765 = pneg %p240
        %p766 = pneg %p237
        %p767 = pneg %p261
        %p768 = pneg %p258
        %p769 = pneg %p282
        %p770 = pneg %p279
        %p771 = pneg %p303
        %p772 = pneg %p300
        %p773 = pneg %p324
        %p774 = pneg %p321
        %p775 = pneg %p345
        %p776 = pneg %p342
        %p777 = pneg %p366
        %p778 = pneg %p363
        %p779 = pneg %p387
        %p780 = pneg %p384
        %p781 = pneg %p408
        %p782 = pneg %p405
        %p783 = pneg %p429
        %p784 = pneg %p426
        %p785 = pneg %p457
        %p786 = pneg %p454
        %s787 = sand.u32 %s444, 1
        %s788 = scalar_lea.sflag [#allocation10], %s787
        %s789 = sand.u32 %s444, 1
        %s790 = smul.addr %s789, 8
        %s791 = scalar_lea.vmem [#allocation25], %s790
        %p792 = scmp.lt.s32.totalorder %s45, 1
        %s793 = scalar_select %p792, %s45, 1
        %p794 = scmp.lt.s32.totalorder %s46, 0
        %s795 = scalar_select %p794, %s46, 0
        %s796 = sadd.s32 %s795, %s793
        %s797 = smul.addr %s796, 2
        %s798 = scalar_lea.vmem %s2, %s797
        %p801 = scmp.eq.s32.totalorder %s46, 0
        // Predicated region
        $region129: #{tpu_custom_call.1} parent=87 // pred_check
          %p802 = pneg %p801
        $region130: #{tpu_custom_call.1} parent=87 // pred_check_branch
          %804 = sbr.rel (%p802) target = $region132
        $region131: #{tpu_custom_call.1} parent=87 // pred_region
          %v805 = vld [vmem:[%s667] sm:$0xff]
          %s806 = sld [smem:[#allocation24]]
          %s807 = sld [smem:[#allocation24 + $0x1]]
          %vm808 = vcmask 261120
          %v809 = vsel %vm808, %v805, 0.0
          %810 = vadd.xlane.f32.xlu0 %v809
          %v811 = vpop.xlane.xlu0 %810
          %v812 = vrcp.pop 32.0
          %v813 = vmul.f32 32.0, %v812
          %v814 = vsub.f32 1.0, %v813
          %v815 = vmul.f32 %v812, %v814
          %v816 = vadd.f32 %v812, %v815
          %vm817 = vweird.f32 %v812
          %v818 = vsel %vm817, %v812, %v816
          %v819 = vmul.f32 %v811, %v818
          %v820 = vsub.f32 %v805, %v819
          %v821 = vmul.f32 %v820, %v820
          %v822 = vsel %vm808, %v821, 0.0
          %823 = vadd.xlane.f32.xlu0 %v822
          %v824 = vpop.xlane.xlu0 %823
          %v825 = vmul.f32 %v824, 0.032258064
          %v826 = vrsqrt.pop %v825
          %v827 = vmul.f32 %v826, %v825
          %v828 = vmul.f32 %v827, %v826
          %v829 = vmul.f32 0.5, %v828
          %v830 = vsub.f32 1.5, %v829
          %v831 = vmul.f32 %v826, %v830
          %v832 = vmul.f32 %v825, %v831
          %vm833 = vcmp.eq.f32.partialorder %v825, inf
          %v834 = vsel %vm833, %v825, %v832
          %vm835 = vcmp.eq.f32.partialorder %v825, 0.0
          %v836 = vand.u32 %v825, 2147483648
          %v837 = vsel %vm835, %v836, %v834
          %v838 = vadd.f32 %v837, 1e-06
          %v839 = vrcp.pop %v838
          %v840 = vmul.f32 %v838, %v839
          %v841 = vsub.f32 1.0, %v840
          %v842 = vmul.f32 %v839, %v841
          %v843 = vadd.f32 %v839, %v842
          %vm844 = vweird.f32 %v838
          %vm845 = vweird.f32 %v839
          %vm846 = vmor %vm844, %vm845
          %v847 = vsel %vm846, %v839, %v843
          %v848 = vand.u32 2147483647, %v838
          %vm849 = vcmp.eq.f32.partialorder %v848, 8.507059e+37
          %v850 = vand.u32 %v838, 2147483648
          %v851 = vor.u32 1.1754944e-38, %v850
          %v852 = vsel %vm849, %v851, %v847
          %v853 = vstv %s806
          %v854 = vmul.f32 %v853, %v820
          %v855 = vmul.f32 %v854, %v852
          %v856 = vstv %s807
          %v857 = vadd.f32 %v855, %v856
          %v858 = vld [vmem:[%s5] sm:$0xff]
          %v859 = vld [vmem:[%s5 + $0x8] sm:$0xff]
          %v860 = vld [vmem:[%s5 + $0x10] sm:$0xff]
          %v861 = vld [vmem:[%s5 + $0x18] sm:$0xff]
          %v863 = vsel %vm808, %v857, 0
          %865 = vmatpush.msra.mxu0 0.0
          %866 = vmatpush.msra.mxu0 0.0
          %867 = vmatpush.msra.mxu0 0.0
          %868 = vmatpush.msra.mxu0 0.0
          %869 = vmatpush.msra.mxu0 0.0
          %870 = vmatpush.msra.mxu0 0.0
          %871 = vmatpush.msra.mxu0 0.0
          %872 = vmatpush.msra.mxu0 0.0
          %873 = vmatpush.msra.mxu0 0.0
          %874 = vmatpush.msra.mxu0 0.0
          %875 = vmatpush.msra.mxu0 0.0
          %876 = vmatpush.msra.mxu0 0.0
          %877 = vmatpush.msra.mxu0 %v861
          %878 = vmatpush.msra.mxu0 %v860
          %879 = vmatpush.msra.mxu0 %v859
          %880 = vmatpush.msra.mxu0 %v858
          %881 = vmatmul.f32.gmra.mxu0 %v863
          %v882 = vpop.f32.mrf.mxu0
          %v883 = vadd.f32 0.0, %v882
          %884 = vdwg.mxu0
          %885 = vst.msk [vmem:[#allocation2] sm:$0xff] %vm808, %v883
          %v886 = vld [vmem:[%s6] sm:$0xff]
          %v887 = vld [vmem:[%s6 + $0x8] sm:$0xff]
          %v888 = vld [vmem:[%s6 + $0x10] sm:$0xff]
          %v889 = vld [vmem:[%s6 + $0x18] sm:$0xff]
          %890 = vmatpush.msra.mxu0 0.0
          %891 = vmatpush.msra.mxu0 0.0
          %892 = vmatpush.msra.mxu0 0.0
          %893 = vmatpush.msra.mxu0 0.0
          %894 = vmatpush.msra.mxu0 0.0
          %895 = vmatpush.msra.mxu0 0.0
          %896 = vmatpush.msra.mxu0 0.0
          %897 = vmatpush.msra.mxu0 0.0
          %898 = vmatpush.msra.mxu0 0.0
          %899 = vmatpush.msra.mxu0 0.0
          %900 = vmatpush.msra.mxu0 0.0
          %901 = vmatpush.msra.mxu0 0.0
          %902 = vmatpush.msra.mxu0 %v889
          %903 = vmatpush.msra.mxu0 %v888
          %904 = vmatpush.msra.mxu0 %v887
          %905 = vmatpush.msra.mxu0 %v886
          %906 = vmatmul.f32.gmra.mxu0 %v863
          %v907 = vpop.f32.mrf.mxu0
          %v908 = vadd.f32 0.0, %v907
          %909 = vdwg.mxu0
          %910 = vst.msk [vmem:[#allocation3] sm:$0xff] %vm808, %v908
          %v911 = vld [vmem:[%s677] sm:$0xff]
          %v912 = vld [vmem:[#allocation18] sm:$0xff]
          %v913 = vld [vmem:[#allocation18 + $0x8] sm:$0xff]
          %v914 = vld [vmem:[#allocation18 + $0x10] sm:$0xff]
          %v915 = vld [vmem:[#allocation18 + $0x18] sm:$0xff]
          %v917 = vsel %vm808, %v911, 0
          %919 = vmatpush.msra.mxu0 0.0
          %920 = vmatpush.msra.mxu0 0.0
          %921 = vmatpush.msra.mxu0 0.0
          %922 = vmatpush.msra.mxu0 0.0
          %923 = vmatpush.msra.mxu0 0.0
          %924 = vmatpush.msra.mxu0 0.0
          %925 = vmatpush.msra.mxu0 0.0
          %926 = vmatpush.msra.mxu0 0.0
          %927 = vmatpush.msra.mxu0 0.0
          %928 = vmatpush.msra.mxu0 0.0
          %929 = vmatpush.msra.mxu0 0.0
          %930 = vmatpush.msra.mxu0 0.0
          %931 = vmatpush.msra.mxu0 %v915
          %932 = vmatpush.msra.mxu0 %v914
          %933 = vmatpush.msra.mxu0 %v913
          %934 = vmatpush.msra.mxu0 %v912
          %935 = vmatmul.f32.gmra.mxu0 %v917
          %v936 = vpop.f32.mrf.mxu0
          %v937 = vadd.f32 0.0, %v936
          %938 = vdwg.mxu0
          %939 = vst.msk [vmem:[#allocation4] sm:$0xff] %vm808, %v937
          %v940 = vld [vmem:[#allocation20] sm:$0xff]
          %v941 = vld [vmem:[#allocation20 + $0x8] sm:$0xff]
          %v942 = vld [vmem:[#allocation20 + $0x10] sm:$0xff]
          %v943 = vld [vmem:[#allocation20 + $0x18] sm:$0xff]
          %944 = vmatpush.msra.mxu0 0.0
          %945 = vmatpush.msra.mxu0 0.0
          %946 = vmatpush.msra.mxu0 0.0
          %947 = vmatpush.msra.mxu0 0.0
          %948 = vmatpush.msra.mxu0 0.0
          %949 = vmatpush.msra.mxu0 0.0
          %950 = vmatpush.msra.mxu0 0.0
          %951 = vmatpush.msra.mxu0 0.0
          %952 = vmatpush.msra.mxu0 0.0
          %953 = vmatpush.msra.mxu0 0.0
          %954 = vmatpush.msra.mxu0 0.0
          %955 = vmatpush.msra.mxu0 0.0
          %956 = vmatpush.msra.mxu0 %v943
          %957 = vmatpush.msra.mxu0 %v942
          %958 = vmatpush.msra.mxu0 %v941
          %959 = vmatpush.msra.mxu0 %v940
          %960 = vmatmul.f32.gmra.mxu0 %v917
          %v961 = vpop.f32.mrf.mxu0
          %v962 = vadd.f32 0.0, %v961
          %963 = vdwg.mxu0
          %964 = vst.msk [vmem:[#allocation5] sm:$0xff] %vm808, %v962
        $region132: #{tpu_custom_call.1} parent=87 // pred_fallthru
          _
        %s965 = smul.u32 %s46, 8
        %s966 = scalar_lea.vmem %s667, %s965 [#allocation8]
        %v967 = vld [vmem:[%s966] sm:$0xff]
        %v968 = vld [vmem:[%s798] sm:$0x3]
        %v969 = vld [vmem:[%s687] sm:$0x3]
        %s970 = sld [smem:[#allocation24]]
        %s971 = sld [smem:[#allocation24 + $0x1]]
        %vm972 = vcmask 261120
        %v973 = vsel %vm972, %v967, 0.0
        %974 = vadd.xlane.f32.xlu0 %v973
        %v975 = vpop.xlane.xlu0 %974
        %v976 = vrcp.pop 32.0
        %v977 = vmul.f32 32.0, %v976
        %v978 = vsub.f32 1.0, %v977
        %v979 = vmul.f32 %v976, %v978
        %v980 = vadd.f32 %v976, %v979
        %vm981 = vweird.f32 %v976
        %v982 = vsel %vm981, %v976, %v980
        %v983 = vmul.f32 %v975, %v982
        %v984 = vsub.f32 %v967, %v983
        %v985 = vmul.f32 %v984, %v984
        %v986 = vsel %vm972, %v985, 0.0
        %987 = vadd.xlane.f32.xlu0 %v986
        %v988 = vpop.xlane.xlu0 %987
        %v989 = vmul.f32 %v988, 0.032258064
        %v990 = vrsqrt.pop %v989
        %v991 = vmul.f32 %v990, %v989
        %v992 = vmul.f32 %v991, %v990
        %v993 = vmul.f32 0.5, %v992
        %v994 = vsub.f32 1.5, %v993
        %v995 = vmul.f32 %v990, %v994
        %v996 = vmul.f32 %v989, %v995
        %vm997 = vcmp.eq.f32.partialorder %v989, inf
        %v998 = vsel %vm997, %v989, %v996
        %vm999 = vcmp.eq.f32.partialorder %v989, 0.0
        %v1000 = vand.u32 %v989, 2147483648
        %v1001 = vsel %vm999, %v1000, %v998
        %v1002 = vadd.f32 %v1001, 1e-06
        %v1003 = vrcp.pop %v1002
        %v1004 = vmul.f32 %v1002, %v1003
        %v1005 = vsub.f32 1.0, %v1004
        %v1006 = vmul.f32 %v1003, %v1005
        %v1007 = vadd.f32 %v1003, %v1006
        %vm1008 = vweird.f32 %v1002
        %vm1009 = vweird.f32 %v1003
        %vm1010 = vmor %vm1008, %vm1009
        %v1011 = vsel %vm1010, %v1003, %v1007
        %v1012 = vand.u32 2147483647, %v1002
        %vm1013 = vcmp.eq.f32.partialorder %v1012, 8.507059e+37
        %v1014 = vand.u32 %v1002, 2147483648
        %v1015 = vor.u32 1.1754944e-38, %v1014
        %v1016 = vsel %vm1013, %v1015, %v1011
        %v1017 = vstv %s970
        %v1018 = vmul.f32 %v1017, %v984
        %v1019 = vmul.f32 %v1018, %v1016
        %v1020 = vstv %s971
        %v1021 = vadd.f32 %v1019, %v1020
        %v1022 = vld [vmem:[%s4] sm:$0xff]
        %v1023 = vld [vmem:[%s4 + $0x8] sm:$0xff]
        %v1024 = vld [vmem:[%s4 + $0x10] sm:$0xff]
        %v1025 = vld [vmem:[%s4 + $0x18] sm:$0xff]
        %v1027 = vsel %vm972, %v1021, 0
        %1029 = vmatpush.msra.mxu0 0.0
        %1030 = vmatpush.msra.mxu0 0.0
        %1031 = vmatpush.msra.mxu0 0.0
        %1032 = vmatpush.msra.mxu0 0.0
        %1033 = vmatpush.msra.mxu0 0.0
        %1034 = vmatpush.msra.mxu0 0.0
        %1035 = vmatpush.msra.mxu0 0.0
        %1036 = vmatpush.msra.mxu0 0.0
        %1037 = vmatpush.msra.mxu0 0.0
        %1038 = vmatpush.msra.mxu0 0.0
        %1039 = vmatpush.msra.mxu0 0.0
        %1040 = vmatpush.msra.mxu0 0.0
        %1041 = vmatpush.msra.mxu0 %v1025
        %1042 = vmatpush.msra.mxu0 %v1024
        %1043 = vmatpush.msra.mxu0 %v1023
        %1044 = vmatpush.msra.mxu0 %v1022
        %1045 = vmatmul.f32.gmra.mxu0 %v1027
        %v1046 = vpop.f32.mrf.mxu0
        %v1047 = vadd.f32 0.0, %v1046
        %1048 = vdwg.mxu0
        %vm1049 = vnez %v968
        %v1050 = vld [vmem:[#allocation2] sm:$0xff]
        %v1051 = vld [vmem:[#allocation3] sm:$0xff]
        %vm1052 = vcmask 130048
        %v1054 = vsel %vm1052, %v1047, 0
        %v1057 = vsel %vm1052, %v1050, 0
        %1059 = vmatpush.xpose.msra.mxu0 0.0
        %1060 = vmatpush.xpose.msra.mxu0 0.0
        %1061 = vmatpush.xpose.msra.mxu0 0.0
        %1062 = vmatpush.xpose.msra.mxu0 0.0
        %1063 = vmatpush.xpose.msra.mxu0 0.0
        %1064 = vmatpush.xpose.msra.mxu0 0.0
        %1065 = vmatpush.xpose.msra.mxu0 0.0
        %1066 = vmatpush.xpose.msra.mxu0 0.0
        %1067 = vmatpush.xpose.msra.mxu0 0.0
        %1068 = vmatpush.xpose.msra.mxu0 0.0
        %1069 = vmatpush.xpose.msra.mxu0 0.0
        %1070 = vmatpush.xpose.msra.mxu0 0.0
        %1071 = vmatpush.xpose.msra.mxu0 0.0
        %1072 = vmatpush.xpose.msra.mxu0 0.0
        %1073 = vmatpush.xpose.msra.mxu0 0.0
        %1074 = vmatpush.xpose.msra.mxu0 %v1057
        %1075 = vmatmul.f32.gmra.mxu0 %v1054
        %v1076 = vpop.f32.mrf.mxu0
        %v1077 = vadd.f32 0.0, %v1076
        %1078 = vdwg.mxu0
        %v1079 = vmul.f32 %v1077, 0.25
        %v1080 = vsel %vm1049, 16843009, 0
        %v1081 = vunpack.c.0.s8 %v1080
        %vm1082 = vcmp.ne.s32.totalorder %v1081, 0
        %v1083 = vsel %vm1082, %v1079, -1e+09
        %vm1084 = vcmask 64512
        %v1085 = vsel %vm1084, %v1083, -inf
        %1086 = vmax.xlane.f32.xlu0 %v1085
        %v1087 = vpop.xlane.xlu0 %1086
        %v1088 = vsub.f32 %v1083, %v1087
        %v1089 = vmul.f32 %v1088, 1.442695
        %v1090 = vpow.pop %v1089
        %v1091 = vsel %vm1084, %v1090, 0.0
        %1092 = vadd.xlane.f32.xlu0 %v1091
        %v1093 = vpop.xlane.xlu0 %1092
        %v1094 = vrcp.pop %v1093
        %v1095 = vmul.f32 %v1093, %v1094
        %v1096 = vsub.f32 1.0, %v1095
        %v1097 = vmul.f32 %v1094, %v1096
        %v1098 = vadd.f32 %v1094, %v1097
        %vm1099 = vweird.f32 %v1093
        %vm1100 = vweird.f32 %v1094
        %vm1101 = vmor %vm1099, %vm1100
        %v1102 = vsel %vm1101, %v1094, %v1098
        %v1103 = vand.u32 2147483647, %v1093
        %vm1104 = vcmp.eq.f32.partialorder %v1103, 8.507059e+37
        %v1105 = vand.u32 %v1093, 2147483648
        %v1106 = vor.u32 1.1754944e-38, %v1105
        %v1107 = vsel %vm1104, %v1106, %v1102
        %v1108 = vmul.f32 %v1090, %v1107
        %v1110 = vsel %vm1084, %v1108, 0
        %1112 = vmatpush.msra.mxu0 0.0
        %1113 = vmatpush.msra.mxu0 0.0
        %1114 = vmatpush.msra.mxu0 0.0
        %1115 = vmatpush.msra.mxu0 0.0
        %1116 = vmatpush.msra.mxu0 0.0
        %1117 = vmatpush.msra.mxu0 0.0
        %1118 = vmatpush.msra.mxu0 0.0
        %1119 = vmatpush.msra.mxu0 0.0
        %1120 = vmatpush.msra.mxu0 0.0
        %1121 = vmatpush.msra.mxu0 0.0
        %1122 = vmatpush.msra.mxu0 0.0
        %1123 = vmatpush.msra.mxu0 0.0
        %1124 = vmatpush.msra.mxu0 0.0
        %1125 = vmatpush.msra.mxu0 0.0
        %1126 = vmatpush.msra.mxu0 0.0
        %1127 = vmatpush.msra.mxu0 %v1051
        %1128 = vmatmul.f32.gmra.mxu0 %v1110
        %v1129 = vpop.f32.mrf.mxu0
        %v1130 = vadd.f32 0.0, %v1129
        %1131 = vdwg.mxu0
        %1132 = vst.msk [vmem:[#allocation6] sm:$0xff] %vm1052, %v1130
        %v1133 = vld [vmem:[#allocation2] sm:$0xff]
        %v1134 = vld [vmem:[#allocation3] sm:$0xff]
        %1135 = vrot.lane.b32.xlu0 %v1047, 112
        %v1136 = vpop.permute.xlu0 %1135
        %1138 = vrot.lane.b32.xlu0 %v1133, 112
        %v1139 = vpop.permute.xlu0 %1138
        %v1140 = vsel %vm1052, %v1136, 0
        %v1142 = vsel %vm1052, %v1139, 0
        %1144 = vmatpush.xpose.msra.mxu0 0.0
        %1145 = vmatpush.xpose.msra.mxu0 0.0
        %1146 = vmatpush.xpose.msra.mxu0 0.0
        %1147 = vmatpush.xpose.msra.mxu0 0.0
        %1148 = vmatpush.xpose.msra.mxu0 0.0
        %1149 = vmatpush.xpose.msra.mxu0 0.0
        %1150 = vmatpush.xpose.msra.mxu0 0.0
        %1151 = vmatpush.xpose.msra.mxu0 0.0
        %1152 = vmatpush.xpose.msra.mxu0 0.0
        %1153 = vmatpush.xpose.msra.mxu0 0.0
        %1154 = vmatpush.xpose.msra.mxu0 0.0
        %1155 = vmatpush.xpose.msra.mxu0 0.0
        %1156 = vmatpush.xpose.msra.mxu0 0.0
        %1157 = vmatpush.xpose.msra.mxu0 0.0
        %1158 = vmatpush.xpose.msra.mxu0 0.0
        %1159 = vmatpush.xpose.msra.mxu0 %v1142
        %1160 = vmatmul.f32.gmra.mxu0 %v1140
        %v1161 = vpop.f32.mrf.mxu0
        %v1162 = vadd.f32 0.0, %v1161
        %1163 = vdwg.mxu0
        %v1164 = vmul.f32 %v1162, 0.25
        %v1165 = vsel %vm1082, %v1164, -1e+09
        %v1166 = vsel %vm1084, %v1165, -inf
        %1167 = vmax.xlane.f32.xlu0 %v1166
        %v1168 = vpop.xlane.xlu0 %1167
        %v1169 = vsub.f32 %v1165, %v1168
        %v1170 = vmul.f32 %v1169, 1.442695
        %v1171 = vpow.pop %v1170
        %v1172 = vsel %vm1084, %v1171, 0.0
        %1173 = vadd.xlane.f32.xlu0 %v1172
        %v1174 = vpop.xlane.xlu0 %1173
        %v1175 = vrcp.pop %v1174
        %v1176 = vmul.f32 %v1174, %v1175
        %v1177 = vsub.f32 1.0, %v1176
        %v1178 = vmul.f32 %v1175, %v1177
        %v1179 = vadd.f32 %v1175, %v1178
        %vm1180 = vweird.f32 %v1174
        %vm1181 = vweird.f32 %v1175
        %vm1182 = vmor %vm1180, %vm1181
        %v1183 = vsel %vm1182, %v1175, %v1179
        %v1184 = vand.u32 2147483647, %v1174
        %vm1185 = vcmp.eq.f32.partialorder %v1184, 8.507059e+37
        %v1186 = vand.u32 %v1174, 2147483648
        %v1187 = vor.u32 1.1754944e-38, %v1186
        %v1188 = vsel %vm1185, %v1187, %v1183
        %v1189 = vmul.f32 %v1171, %v1188
        %1191 = vrot.lane.b32.xlu0 %v1134, 112
        %v1192 = vpop.permute.xlu0 %1191
        %v1195 = vsel %vm1084, %v1189, 0
        %1197 = vmatpush.msra.mxu0 0.0
        %1198 = vmatpush.msra.mxu0 0.0
        %1199 = vmatpush.msra.mxu0 0.0
        %1200 = vmatpush.msra.mxu0 0.0
        %1201 = vmatpush.msra.mxu0 0.0
        %1202 = vmatpush.msra.mxu0 0.0
        %1203 = vmatpush.msra.mxu0 0.0
        %1204 = vmatpush.msra.mxu0 0.0
        %1205 = vmatpush.msra.mxu0 0.0
        %1206 = vmatpush.msra.mxu0 0.0
        %1207 = vmatpush.msra.mxu0 0.0
        %1208 = vmatpush.msra.mxu0 0.0
        %1209 = vmatpush.msra.mxu0 0.0
        %1210 = vmatpush.msra.mxu0 0.0
        %1211 = vmatpush.msra.mxu0 0.0
        %1212 = vmatpush.msra.mxu0 %v1192
        %1213 = vmatmul.f32.gmra.mxu0 %v1195
        %v1214 = vpop.f32.mrf.mxu0
        %v1215 = vadd.f32 0.0, %v1214
        %1216 = vdwg.mxu0
        %1218 = vrot.lane.b32.xlu0 %v1215, 16
        %v1219 = vpop.permute.xlu0 %1218
        %vm1221 = vcmask 261248
        %1222 = vst.msk [vmem:[#allocation6] sm:$0xff] %vm1221, %v1219
        %v1223 = vld [vmem:[#allocation6] sm:$0xff]
        %v1224 = vld [vmem:[#allocation15] sm:$0xff]
        %v1225 = vld [vmem:[#allocation15 + $0x8] sm:$0xff]
        %v1226 = vld [vmem:[#allocation15 + $0x10] sm:$0xff]
        %v1227 = vld [vmem:[#allocation15 + $0x18] sm:$0xff]
        %v1229 = vsel %vm972, %v1223, 0
        %1231 = vmatpush.msra.mxu0 0.0
        %1232 = vmatpush.msra.mxu0 0.0
        %1233 = vmatpush.msra.mxu0 0.0
        %1234 = vmatpush.msra.mxu0 0.0
        %1235 = vmatpush.msra.mxu0 0.0
        %1236 = vmatpush.msra.mxu0 0.0
        %1237 = vmatpush.msra.mxu0 0.0
        %1238 = vmatpush.msra.mxu0 0.0
        %1239 = vmatpush.msra.mxu0 0.0
        %1240 = vmatpush.msra.mxu0 0.0
        %1241 = vmatpush.msra.mxu0 0.0
        %1242 = vmatpush.msra.mxu0 0.0
        %1243 = vmatpush.msra.mxu0 %v1227
        %1244 = vmatpush.msra.mxu0 %v1226
        %1245 = vmatpush.msra.mxu0 %v1225
        %1246 = vmatpush.msra.mxu0 %v1224
        %1247 = vmatmul.f32.gmra.mxu0 %v1229
        %v1248 = vpop.f32.mrf.mxu0
        %v1249 = vadd.f32 0.0, %v1248
        %1250 = vdwg.mxu0
        %v1251 = vadd.f32 %v967, %v1249
        %s1252 = sld [smem:[#allocation24 + $0x80]]
        %s1253 = sld [smem:[#allocation24 + $0x81]]
        %v1254 = vsel %vm972, %v1251, 0.0
        %1255 = vadd.xlane.f32.xlu0 %v1254
        %v1256 = vpop.xlane.xlu0 %1255
        %v1257 = vmul.f32 %v1256, %v982
        %v1258 = vsub.f32 %v1251, %v1257
        %v1259 = vmul.f32 %v1258, %v1258
        %v1260 = vsel %vm972, %v1259, 0.0
        %1261 = vadd.xlane.f32.xlu0 %v1260
        %v1262 = vpop.xlane.xlu0 %1261
        %v1263 = vmul.f32 %v1262, 0.032258064
        %v1264 = vrsqrt.pop %v1263
        %v1265 = vmul.f32 %v1264, %v1263
        %v1266 = vmul.f32 %v1265, %v1264
        %v1267 = vmul.f32 0.5, %v1266
        %v1268 = vsub.f32 1.5, %v1267
        %v1269 = vmul.f32 %v1264, %v1268
        %v1270 = vmul.f32 %v1263, %v1269
        %vm1271 = vcmp.eq.f32.partialorder %v1263, inf
        %v1272 = vsel %vm1271, %v1263, %v1270
        %vm1273 = vcmp.eq.f32.partialorder %v1263, 0.0
        %v1274 = vand.u32 %v1263, 2147483648
        %v1275 = vsel %vm1273, %v1274, %v1272
        %v1276 = vadd.f32 %v1275, 1e-06
        %v1277 = vrcp.pop %v1276
        %v1278 = vmul.f32 %v1276, %v1277
        %v1279 = vsub.f32 1.0, %v1278
        %v1280 = vmul.f32 %v1277, %v1279
        %v1281 = vadd.f32 %v1277, %v1280
        %vm1282 = vweird.f32 %v1276
        %vm1283 = vweird.f32 %v1277
        %vm1284 = vmor %vm1282, %vm1283
        %v1285 = vsel %vm1284, %v1277, %v1281
        %v1286 = vand.u32 2147483647, %v1276
        %vm1287 = vcmp.eq.f32.partialorder %v1286, 8.507059e+37
        %v1288 = vand.u32 %v1276, 2147483648
        %v1289 = vor.u32 1.1754944e-38, %v1288
        %v1290 = vsel %vm1287, %v1289, %v1285
        %v1291 = vstv %s1252
        %v1292 = vmul.f32 %v1291, %v1258
        %v1293 = vmul.f32 %v1292, %v1290
        %v1294 = vstv %s1253
        %v1295 = vadd.f32 %v1293, %v1294
        %v1296 = vld [vmem:[#allocation17] sm:$0xff]
        %v1297 = vld [vmem:[#allocation17 + $0x8] sm:$0xff]
        %v1298 = vld [vmem:[#allocation17 + $0x10] sm:$0xff]
        %v1299 = vld [vmem:[#allocation17 + $0x18] sm:$0xff]
        %v1301 = vsel %vm972, %v1295, 0
        %1303 = vmatpush.msra.mxu0 0.0
        %1304 = vmatpush.msra.mxu0 0.0
        %1305 = vmatpush.msra.mxu0 0.0
        %1306 = vmatpush.msra.mxu0 0.0
        %1307 = vmatpush.msra.mxu0 0.0
        %1308 = vmatpush.msra.mxu0 0.0
        %1309 = vmatpush.msra.mxu0 0.0
        %1310 = vmatpush.msra.mxu0 0.0
        %1311 = vmatpush.msra.mxu0 0.0
        %1312 = vmatpush.msra.mxu0 0.0
        %1313 = vmatpush.msra.mxu0 0.0
        %1314 = vmatpush.msra.mxu0 0.0
        %1315 = vmatpush.msra.mxu0 %v1299
        %1316 = vmatpush.msra.mxu0 %v1298
        %1317 = vmatpush.msra.mxu0 %v1297
        %1318 = vmatpush.msra.mxu0 %v1296
        %1319 = vmatmul.f32.gmra.mxu0 %v1301
        %v1320 = vpop.f32.mrf.mxu0
        %v1321 = vadd.f32 0.0, %v1320
        %1322 = vdwg.mxu0
        %vm1323 = vnez %v969
        %v1324 = vld [vmem:[#allocation4] sm:$0xff]
        %v1325 = vld [vmem:[#allocation5] sm:$0xff]
        %v1327 = vsel %vm1052, %v1321, 0
        %v1330 = vsel %vm1052, %v1324, 0
        %1332 = vmatpush.xpose.msra.mxu0 0.0
        %1333 = vmatpush.xpose.msra.mxu0 0.0
        %1334 = vmatpush.xpose.msra.mxu0 0.0
        %1335 = vmatpush.xpose.msra.mxu0 0.0
        %1336 = vmatpush.xpose.msra.mxu0 0.0
        %1337 = vmatpush.xpose.msra.mxu0 0.0
        %1338 = vmatpush.xpose.msra.mxu0 0.0
        %1339 = vmatpush.xpose.msra.mxu0 0.0
        %1340 = vmatpush.xpose.msra.mxu0 0.0
        %1341 = vmatpush.xpose.msra.mxu0 0.0
        %1342 = vmatpush.xpose.msra.mxu0 0.0
        %1343 = vmatpush.xpose.msra.mxu0 0.0
        %1344 = vmatpush.xpose.msra.mxu0 0.0
        %1345 = vmatpush.xpose.msra.mxu0 0.0
        %1346 = vmatpush.xpose.msra.mxu0 0.0
        %1347 = vmatpush.xpose.msra.mxu0 %v1330
        %1348 = vmatmul.f32.gmra.mxu0 %v1327
        %v1349 = vpop.f32.mrf.mxu0
        %v1350 = vadd.f32 0.0, %v1349
        %1351 = vdwg.mxu0
        %v1352 = vmul.f32 %v1350, 0.25
        %v1353 = vsel %vm1323, 16843009, 0
        %v1354 = vunpack.c.0.s8 %v1353
        %vm1355 = vcmp.ne.s32.totalorder %v1354, 0
        %v1356 = vsel %vm1355, %v1352, -1e+09
        %v1357 = vsel %vm1084, %v1356, -inf
        %1358 = vmax.xlane.f32.xlu0 %v1357
        %v1359 = vpop.xlane.xlu0 %1358
        %v1360 = vsub.f32 %v1356, %v1359
        %v1361 = vmul.f32 %v1360, 1.442695
        %v1362 = vpow.pop %v1361
        %v1363 = vsel %vm1084, %v1362, 0.0
        %1364 = vadd.xlane.f32.xlu0 %v1363
        %v1365 = vpop.xlane.xlu0 %1364
        %v1366 = vrcp.pop %v1365
        %v1367 = vmul.f32 %v1365, %v1366
        %v1368 = vsub.f32 1.0, %v1367
        %v1369 = vmul.f32 %v1366, %v1368
        %v1370 = vadd.f32 %v1366, %v1369
        %vm1371 = vweird.f32 %v1365
        %vm1372 = vweird.f32 %v1366
        %vm1373 = vmor %vm1371, %vm1372
        %v1374 = vsel %vm1373, %v1366, %v1370
        %v1375 = vand.u32 2147483647, %v1365
        %vm1376 = vcmp.eq.f32.partialorder %v1375, 8.507059e+37
        %v1377 = vand.u32 %v1365, 2147483648
        %v1378 = vor.u32 1.1754944e-38, %v1377
        %v1379 = vsel %vm1376, %v1378, %v1374
        %v1380 = vmul.f32 %v1362, %v1379
        %v1382 = vsel %vm1084, %v1380, 0
        %1384 = vmatpush.msra.mxu0 0.0
        %1385 = vmatpush.msra.mxu0 0.0
        %1386 = vmatpush.msra.mxu0 0.0
        %1387 = vmatpush.msra.mxu0 0.0
        %1388 = vmatpush.msra.mxu0 0.0
        %1389 = vmatpush.msra.mxu0 0.0
        %1390 = vmatpush.msra.mxu0 0.0
        %1391 = vmatpush.msra.mxu0 0.0
        %1392 = vmatpush.msra.mxu0 0.0
        %1393 = vmatpush.msra.mxu0 0.0
        %1394 = vmatpush.msra.mxu0 0.0
        %1395 = vmatpush.msra.mxu0 0.0
        %1396 = vmatpush.msra.mxu0 0.0
        %1397 = vmatpush.msra.mxu0 0.0
        %1398 = vmatpush.msra.mxu0 0.0
        %1399 = vmatpush.msra.mxu0 %v1325
        %1400 = vmatmul.f32.gmra.mxu0 %v1382
        %v1401 = vpop.f32.mrf.mxu0
        %v1402 = vadd.f32 0.0, %v1401
        %1403 = vdwg.mxu0
        %1404 = vst.msk [vmem:[#allocation7] sm:$0xff] %vm1052, %v1402
        %v1405 = vld [vmem:[#allocation4] sm:$0xff]
        %v1406 = vld [vmem:[#allocation5] sm:$0xff]
        %1407 = vrot.lane.b32.xlu0 %v1321, 112
        %v1408 = vpop.permute.xlu0 %1407
        %1410 = vrot.lane.b32.xlu0 %v1405, 112
        %v1411 = vpop.permute.xlu0 %1410
        %v1412 = vsel %vm1052, %v1408, 0
        %v1414 = vsel %vm1052, %v1411, 0
        %1416 = vmatpush.xpose.msra.mxu0 0.0
        %1417 = vmatpush.xpose.msra.mxu0 0.0
        %1418 = vmatpush.xpose.msra.mxu0 0.0
        %1419 = vmatpush.xpose.msra.mxu0 0.0
        %1420 = vmatpush.xpose.msra.mxu0 0.0
        %1421 = vmatpush.xpose.msra.mxu0 0.0
        %1422 = vmatpush.xpose.msra.mxu0 0.0
        %1423 = vmatpush.xpose.msra.mxu0 0.0
        %1424 = vmatpush.xpose.msra.mxu0 0.0
        %1425 = vmatpush.xpose.msra.mxu0 0.0
        %1426 = vmatpush.xpose.msra.mxu0 0.0
        %1427 = vmatpush.xpose.msra.mxu0 0.0
        %1428 = vmatpush.xpose.msra.mxu0 0.0
        %1429 = vmatpush.xpose.msra.mxu0 0.0
        %1430 = vmatpush.xpose.msra.mxu0 0.0
        %1431 = vmatpush.xpose.msra.mxu0 %v1414
        %1432 = vmatmul.f32.gmra.mxu0 %v1412
        %v1433 = vpop.f32.mrf.mxu0
        %v1434 = vadd.f32 0.0, %v1433
        %1435 = vdwg.mxu0
        %v1436 = vmul.f32 %v1434, 0.25
        %v1437 = vsel %vm1355, %v1436, -1e+09
        %v1438 = vsel %vm1084, %v1437, -inf
        %1439 = vmax.xlane.f32.xlu0 %v1438
        %v1440 = vpop.xlane.xlu0 %1439
        %v1441 = vsub.f32 %v1437, %v1440
        %v1442 = vmul.f32 %v1441, 1.442695
        %v1443 = vpow.pop %v1442
        %v1444 = vsel %vm1084, %v1443, 0.0
        %1445 = vadd.xlane.f32.xlu0 %v1444
        %v1446 = vpop.xlane.xlu0 %1445
        %v1447 = vrcp.pop %v1446
        %v1448 = vmul.f32 %v1446, %v1447
        %v1449 = vsub.f32 1.0, %v1448
        %v1450 = vmul.f32 %v1447, %v1449
        %v1451 = vadd.f32 %v1447, %v1450
        %vm1452 = vweird.f32 %v1446
        %vm1453 = vweird.f32 %v1447
        %vm1454 = vmor %vm1452, %vm1453
        %v1455 = vsel %vm1454, %v1447, %v1451
        %v1456 = vand.u32 2147483647, %v1446
        %vm1457 = vcmp.eq.f32.partialorder %v1456, 8.507059e+37
        %v1458 = vand.u32 %v1446, 2147483648
        %v1459 = vor.u32 1.1754944e-38, %v1458
        %v1460 = vsel %vm1457, %v1459, %v1455
        %v1461 = vmul.f32 %v1443, %v1460
        %1463 = vrot.lane.b32.xlu0 %v1406, 112
        %v1464 = vpop.permute.xlu0 %1463
        %v1467 = vsel %vm1084, %v1461, 0
        %1469 = vmatpush.msra.mxu0 0.0
        %1470 = vmatpush.msra.mxu0 0.0
        %1471 = vmatpush.msra.mxu0 0.0
        %1472 = vmatpush.msra.mxu0 0.0
        %1473 = vmatpush.msra.mxu0 0.0
        %1474 = vmatpush.msra.mxu0 0.0
        %1475 = vmatpush.msra.mxu0 0.0
        %1476 = vmatpush.msra.mxu0 0.0
        %1477 = vmatpush.msra.mxu0 0.0
        %1478 = vmatpush.msra.mxu0 0.0
        %1479 = vmatpush.msra.mxu0 0.0
        %1480 = vmatpush.msra.mxu0 0.0
        %1481 = vmatpush.msra.mxu0 0.0
        %1482 = vmatpush.msra.mxu0 0.0
        %1483 = vmatpush.msra.mxu0 0.0
        %1484 = vmatpush.msra.mxu0 %v1464
        %1485 = vmatmul.f32.gmra.mxu0 %v1467
        %v1486 = vpop.f32.mrf.mxu0
        %v1487 = vadd.f32 0.0, %v1486
        %1488 = vdwg.mxu0
        %1490 = vrot.lane.b32.xlu0 %v1487, 16
        %v1491 = vpop.permute.xlu0 %1490
        %1493 = vst.msk [vmem:[#allocation7] sm:$0xff] %vm1221, %v1491
        %v1494 = vld [vmem:[#allocation7] sm:$0xff]
        %v1495 = vld [vmem:[#allocation21] sm:$0xff]
        %v1496 = vld [vmem:[#allocation21 + $0x8] sm:$0xff]
        %v1497 = vld [vmem:[#allocation21 + $0x10] sm:$0xff]
        %v1498 = vld [vmem:[#allocation21 + $0x18] sm:$0xff]
        %v1500 = vsel %vm972, %v1494, 0
        %1502 = vmatpush.msra.mxu0 0.0
        %1503 = vmatpush.msra.mxu0 0.0
        %1504 = vmatpush.msra.mxu0 0.0
        %1505 = vmatpush.msra.mxu0 0.0
        %1506 = vmatpush.msra.mxu0 0.0
        %1507 = vmatpush.msra.mxu0 0.0
        %1508 = vmatpush.msra.mxu0 0.0
        %1509 = vmatpush.msra.mxu0 0.0
        %1510 = vmatpush.msra.mxu0 0.0
        %1511 = vmatpush.msra.mxu0 0.0
        %1512 = vmatpush.msra.mxu0 0.0
        %1513 = vmatpush.msra.mxu0 0.0
        %1514 = vmatpush.msra.mxu0 %v1498
        %1515 = vmatpush.msra.mxu0 %v1497
        %1516 = vmatpush.msra.mxu0 %v1496
        %1517 = vmatpush.msra.mxu0 %v1495
        %1518 = vmatmul.f32.gmra.mxu0 %v1500
        %v1519 = vpop.f32.mrf.mxu0
        %v1520 = vadd.f32 0.0, %v1519
        %1521 = vdwg.mxu0
        %v1522 = vadd.f32 %v1251, %v1520
        %s1523 = sld [smem:[#allocation24 + $0x100]]
        %s1524 = sld [smem:[#allocation24 + $0x101]]
        %v1525 = vsel %vm972, %v1522, 0.0
        %1526 = vadd.xlane.f32.xlu0 %v1525
        %v1527 = vpop.xlane.xlu0 %1526
        %v1528 = vmul.f32 %v1527, %v982
        %v1529 = vsub.f32 %v1522, %v1528
        %v1530 = vmul.f32 %v1529, %v1529
        %v1531 = vsel %vm972, %v1530, 0.0
        %1532 = vadd.xlane.f32.xlu0 %v1531
        %v1533 = vpop.xlane.xlu0 %1532
        %v1534 = vmul.f32 %v1533, 0.032258064
        %v1535 = vrsqrt.pop %v1534
        %v1536 = vmul.f32 %v1535, %v1534
        %v1537 = vmul.f32 %v1536, %v1535
        %v1538 = vmul.f32 0.5, %v1537
        %v1539 = vsub.f32 1.5, %v1538
        %v1540 = vmul.f32 %v1535, %v1539
        %v1541 = vmul.f32 %v1534, %v1540
        %vm1542 = vcmp.eq.f32.partialorder %v1534, inf
        %v1543 = vsel %vm1542, %v1534, %v1541
        %vm1544 = vcmp.eq.f32.partialorder %v1534, 0.0
        %v1545 = vand.u32 %v1534, 2147483648
        %v1546 = vsel %vm1544, %v1545, %v1543
        %v1547 = vadd.f32 %v1546, 1e-06
        %v1548 = vrcp.pop %v1547
        %v1549 = vmul.f32 %v1547, %v1548
        %v1550 = vsub.f32 1.0, %v1549
        %v1551 = vmul.f32 %v1548, %v1550
        %v1552 = vadd.f32 %v1548, %v1551
        %vm1553 = vweird.f32 %v1547
        %vm1554 = vweird.f32 %v1548
        %vm1555 = vmor %vm1553, %vm1554
        %v1556 = vsel %vm1555, %v1548, %v1552
        %v1557 = vand.u32 2147483647, %v1547
        %vm1558 = vcmp.eq.f32.partialorder %v1557, 8.507059e+37
        %v1559 = vand.u32 %v1547, 2147483648
        %v1560 = vor.u32 1.1754944e-38, %v1559
        %v1561 = vsel %vm1558, %v1560, %v1556
        %v1562 = vstv %s1523
        %v1563 = vmul.f32 %v1562, %v1529
        %v1564 = vmul.f32 %v1563, %v1561
        %v1565 = vstv %s1524
        %v1566 = vadd.f32 %v1564, %v1565
        %v1567 = vld [vmem:[#allocation23] sm:$0xff]
        %v1568 = vld [vmem:[#allocation23 + $0x8] sm:$0xff]
        %v1569 = vld [vmem:[#allocation23 + $0x10] sm:$0xff]
        %v1570 = vld [vmem:[#allocation23 + $0x18] sm:$0xff]
        %v1571 = vld [vmem:[%s13] sm:$0x1]
        %v1573 = vperm.slane %v1571, 0
        %v1576 = vsel %vm972, %v1566, 0
        %1578 = vmatpush.msra.mxu0 0.0
        %1579 = vmatpush.msra.mxu0 0.0
        %1580 = vmatpush.msra.mxu0 0.0
        %1581 = vmatpush.msra.mxu0 0.0
        %1582 = vmatpush.msra.mxu0 0.0
        %1583 = vmatpush.msra.mxu0 0.0
        %1584 = vmatpush.msra.mxu0 0.0
        %1585 = vmatpush.msra.mxu0 0.0
        %1586 = vmatpush.msra.mxu0 0.0
        %1587 = vmatpush.msra.mxu0 0.0
        %1588 = vmatpush.msra.mxu0 0.0
        %1589 = vmatpush.msra.mxu0 0.0
        %1590 = vmatpush.msra.mxu0 %v1570
        %1591 = vmatpush.msra.mxu0 %v1569
        %1592 = vmatpush.msra.mxu0 %v1568
        %1593 = vmatpush.msra.mxu0 %v1567
        %1594 = vmatmul.f32.gmra.mxu0 %v1576
        %v1595 = vpop.f32.mrf.mxu0
        %v1596 = vadd.f32 %v1573, %v1595
        %1597 = vdwg.mxu0
        %v1598 = vmax.f32 %v1596, 0.0
        %v1599 = vld [vmem:[%s14] sm:$0xff]
        %v1600 = vld [vmem:[%s14 + $0x8] sm:$0xff]
        %v1601 = vld [vmem:[%s14 + $0x10] sm:$0xff]
        %v1602 = vld [vmem:[%s14 + $0x18] sm:$0xff]
        %v1603 = vld [vmem:[%s14 + $0x20] sm:$0xff]
        %v1604 = vld [vmem:[%s14 + $0x28] sm:$0xff]
        %v1605 = vld [vmem:[%s14 + $0x30] sm:$0xff]
        %v1606 = vld [vmem:[%s14 + $0x38] sm:$0xff]
        %v1607 = vld [vmem:[%s15] sm:$0x1]
        %v1609 = vperm.slane %v1607, 0
        %vm1611 = vcmask 523264
        %v1613 = vsel %vm1611, %v1598, 0
        %1615 = vmatpush.msra.mxu0 0.0
        %1616 = vmatpush.msra.mxu0 0.0
        %1617 = vmatpush.msra.mxu0 0.0
        %1618 = vmatpush.msra.mxu0 0.0
        %1619 = vmatpush.msra.mxu0 0.0
        %1620 = vmatpush.msra.mxu0 0.0
        %1621 = vmatpush.msra.mxu0 0.0
        %1622 = vmatpush.msra.mxu0 0.0
        %1623 = vmatpush.msra.mxu0 %v1606
        %1624 = vmatpush.msra.mxu0 %v1605
        %1625 = vmatpush.msra.mxu0 %v1604
        %1626 = vmatpush.msra.mxu0 %v1603
        %1627 = vmatpush.msra.mxu0 %v1602
        %1628 = vmatpush.msra.mxu0 %v1601
        %1629 = vmatpush.msra.mxu0 %v1600
        %1630 = vmatpush.msra.mxu0 %v1599
        %1631 = vmatmul.f32.gmra.mxu0 %v1613
        %v1632 = vpop.f32.mrf.mxu0
        %v1633 = vadd.f32 %v1609, %v1632
        %1634 = vdwg.mxu0
        %v1635 = vadd.f32 %v1522, %v1633
        %1636 = vst.msk [vmem:[%s791] sm:$0xff] %vm972, %v1635
        %s1637 = sand.u32 %s444, 1
        %s1638 = scalar_lea.sflag [#allocation10], %s1637
        %s1639 = sand.u32 %s444, 1
        %s1640 = smul.addr %s1639, 8
        %s1641 = scalar_lea.vmem [#allocation25], %s1640
        // Predicated region
        $region133: #{tpu_custom_call.1} parent=87 // pred_check
          %p1642 = pneg %p454
        $region134: #{tpu_custom_call.1} parent=87 // pred_check_branch
          %1644 = sbr.rel (%p1642) target = $region136
        $region135: #{tpu_custom_call.1} parent=87 // pred_region
          %1646 = vsyncadd %s1638, 0
          %s1647 = sadd.s32 %s46, %s45
          %s1648 = smul.addr %s1647, 8
          %s1649 = scalar_lea.hbm %s17, %s1648
          %s1651 = sshll.u32 %s1641, 4
          %s1652 = int_to_ptr.vmem [resolvable:$true] %s1651
          %s1653 = sshll.u32 %s1649, 4
          %s1654 = int_to_ptr.hbm [resolvable:$true] %s1653
          %1656 = dma.vmem_to_hbm [thread:$0]  %s1652, 128, %s1654, %s1638
        $region136: #{tpu_custom_call.1} parent=87 // pred_fallthru
          _
      $region88: #{tpu_custom_call.1} parent=5 // pred_fallthru
        _
      %p1657 = scmp.le.s32.totalorder 2, %s36
      // Predicated region
      $region137: #{tpu_custom_call.1} parent=5 // pred_check
        %p1658 = pneg %p1657
      $region138: #{tpu_custom_call.1} parent=5 // pred_check_branch
        %1660 = sbr.rel (%p1658) target = $region140
      $region139: #{tpu_custom_call.1} parent=5 // pred_region
        %s1661 = ssub.s32 %s36, 2
        // Predicated region
        $region141: #{tpu_custom_call.1} parent=139 // pred_check
          %p1662 = pneg %p460
        $region142: #{tpu_custom_call.1} parent=139 // pred_check_branch
          %1664 = sbr.rel (%p1662) target = $region144
        $region143: #{tpu_custom_call.1} parent=139 // pred_region
          %s1665 = sand.u32 %s445, 1
          %s1666 = scalar_lea.sflag [#allocation10], %s1665
          %s1667 = sand.u32 %s445, 1
          %s1668 = smul.addr %s1667, 8
          %s1669 = scalar_lea.vmem [#allocation25], %s1668
          %1671 = dma.done %s1666, 128
        $region144: #{tpu_custom_call.1} parent=139 // pred_fallthru
          _
      $region140: #{tpu_custom_call.1} parent=5 // pred_fallthru
        _
    $region6: #{tpu_custom_call.1} parent=1 // loop_footer
      %s40 = sadd.s32 1, %s36
    $region7: #{tpu_custom_call.1} parent=1 // loop_footer_branch
      %35 = sbr.rel target = $region3
    $region8: #{tpu_custom_call.1} parent=1 // loop_exit
      _
    %1672 = vsyncpa [#allocation9], 1
    %s1673 = scalar_lea.sflag [#allocation9], 1
    %1674 = vsyncpa %s1673, 1
    %1675 = vsyncpa [#allocation13], 1
    %s1676 = scalar_lea.sflag [#allocation13], 1
    %1677 = vsyncpa %s1676, 1
    %1678 = vsyncpa [#allocation16], 1
    %1679 = vsyncpa [#allocation19], 1
    %1680 = vsyncpa [#allocation22], 1
    %1681 = vsyncpa [#allocation10], 1
    %s1682 = scalar_lea.sflag [#allocation10], 1
    %1683 = vsyncpa %s1682, 1
    %1684 = vsyncpa [#allocation11], 1
    %s1685 = scalar_lea.sflag [#allocation11], 1
    %1686 = vsyncpa %s1685, 1

</llo_original>
